<compile_context>
chip_gen: v7x
topology: tpu7x:2x2x1
jax: 0.10.0
libtpu: 0.0.40
codegen_flags: <defaults>
</compile_context>

<pallas_src>
import functools

import jax
import jax.numpy as jnp
from jax import lax
from jax.experimental import pallas as pl
from jax.experimental.pallas import tpu as pltpu


def _round_up(x, m):
    return ((x + m - 1) // m) * m


def _split_f32_to_bf16x3(table_f32):
    """Split f32 -> (hi, mid, lo) bf16 with hi+mid+lo == table exactly
    (each component holds ~8 mantissa bits; 3x8 >= f32's 24)."""
    hi = table_f32.astype(jnp.bfloat16)
    r1 = table_f32 - hi.astype(jnp.float32)
    mid = r1.astype(jnp.bfloat16)
    r2 = r1 - mid.astype(jnp.float32)
    lo = r2.astype(jnp.bfloat16)
    return hi, mid, lo


def _embed_onehot_kernel(ids_ref, hi_ref, mid_ref, lo_ref, out_ref, *, k_tile):
    # ids_ref:            VMEM (token_block, 1) int32   -- token ids (column)
    # hi/mid/lo_ref:      VMEM (vocab_p, d_model) bf16  -- resident table split
    # out_ref:            VMEM (token_block, d_model)   -- lane-dense output tile
    token_block, d_model = out_ref.shape
    vocab_p = hi_ref.shape[0]
    n_chunks = vocab_p // k_tile

    ids_col = ids_ref[...]                                   # (T, 1) int32

    def chunk_body(c, acc):
        base = c * k_tile
        if not isinstance(base, int):
            base = pl.multiple_of(base, k_tile)              # aligned dynamic slice
        # (T, K) one-hot, built in MXU-native (M, K) orientation; exact 0/1 in bf16.
        v_iota = lax.broadcasted_iota(jnp.int32, (token_block, k_tile), 1) + base
        onehot = (v_iota == ids_col).astype(jnp.bfloat16)
        # Three DEFAULT-precision bf16 MXU passes, f32 accumulation -> exact f32 rows.
        for comp_ref in (hi_ref, mid_ref, lo_ref):
            acc = acc + jnp.dot(onehot, comp_ref[pl.ds(base, k_tile), :],
                                preferred_element_type=jnp.float32)
        return acc

    acc0 = jnp.zeros((token_block, d_model), jnp.float32)
    if n_chunks == 1:
        acc = chunk_body(0, acc0)
    else:
        acc = lax.fori_loop(0, n_chunks, chunk_body, acc0)
    out_ref[...] = acc.astype(out_ref.dtype)


def embedder_forward(x, table, *, token_block=None, k_tile=2048):
    """Pallas equivalent of Embedder.forward: self.embed(x.int())."""
    batch, seq = x.shape
    vocab, d_model = table.shape

    # --- vocab padding & contraction chunking --------------------------------
    # 256 covers MXU K alignment on v6e/v7x (v5e only needs 128; harmless there).
    vocab_p = _round_up(vocab, 256)
    if vocab_p > k_tile:
        vocab_p = _round_up(vocab_p, k_tile)
        kt = k_tile
    else:
        kt = vocab_p

    table_f32 = table.astype(jnp.float32)
    if vocab_p != vocab:
        table_f32 = jnp.pad(table_f32, ((0, vocab_p - vocab), (0, 0)))
    # One-time split (in a real model, do this once at parameter setup).
    hi, mid, lo = _split_f32_to_bf16x3(table_f32)

    # --- token tiling (adaptive so tiny/decode calls don't pad to 512) -------
    ids = x.astype(jnp.int32).reshape(-1)
    n_tokens = ids.shape[0]
    if token_block is None:
        token_block = min(512, _round_up(max(n_tokens, 1), 256))
    n_pad = _round_up(n_tokens, token_block)
    if n_pad != n_tokens:
        ids = jnp.pad(ids, (0, n_pad - n_tokens))   # pad id 0; rows sliced off below
    n_blocks = n_pad // token_block
    # Column layout so the kernel never relayouts ids lane->sublane.
    ids_col = ids.reshape(n_pad, 1)

    out_dtype = table.dtype
    out_itemsize = jnp.dtype(out_dtype).itemsize

    # --- generation-aware VMEM capacity (128 MiB v5e/v6e, 64 MiB/TC v7x) -----
    try:
        vmem_cap = int(pltpu.get_tpu_info().vmem_capacity_bytes)
    except Exception:
        vmem_cap = 64 << 20                           # conservative (v7x per-TC)
    vmem_usable = (vmem_cap * 3) // 4                 # headroom for Mosaic internals

    kernel = functools.partial(_embed_onehot_kernel, k_tile=kt)

    def run(single_buffer_table):
        n_buf = 1 if single_buffer_table else 2
        table_bytes = 3 * n_buf * vocab_p * d_model * 2        # bf16 hi/mid/lo
        out_bytes = 2 * token_block * d_model * out_itemsize   # double-buffered out
        ids_bytes = 2 * token_block * 128 * 4                  # (T,1) i32 pads to 128 lanes
        onehot_bytes = token_block * kt * 2                    # bf16 one-hot temp
        acc_bytes = token_block * d_model * 4                  # f32 accumulator
        vmem_need = table_bytes + out_bytes + ids_bytes + onehot_bytes + acc_bytes
        if vmem_need > vmem_usable:
            raise NotImplementedError(
                "embedding table too large for the VMEM-resident one-hot path "
                f"(~{vmem_need >> 20} MiB needed, ~{vmem_usable >> 20} MiB usable); "
                "use an HBM row-gather DMA kernel instead")
        vmem_limit = min(max(vmem_need + (4 << 20), 32 << 20), vmem_usable)

        table_idx = lambda i: (0, 0)                  # constant -> fetched once
        if single_buffer_table:
            table_spec = pl.BlockSpec((vocab_p, d_model), table_idx,
                                      pipeline_mode=pl.Buffered(1))
        else:
            table_spec = pl.BlockSpec((vocab_p, d_model), table_idx)

        return pl.pallas_call(
            kernel,
            out_shape=jax.ShapeDtypeStruct((n_pad, d_model), out_dtype),
            grid=(n_blocks,),
            in_specs=[
                pl.BlockSpec((token_block, 1), lambda i: (i, 0)),   # ids column tile
                table_spec, table_spec, table_spec,                 # resident table split
            ],
            out_specs=pl.BlockSpec((token_block, d_model), lambda i: (i, 0)),
            compiler_params=pltpu.CompilerParams(
                # Independent token tiles -> v7x megacore; neutral on v5e/v6e.
                dimension_semantics=("parallel",),
                vmem_limit_bytes=vmem_limit,
            ),
        )(ids_col, hi, mid, lo)

    if hasattr(pl, "Buffered"):
        try:
            out_flat = run(True)
        except NotImplementedError:
            raise
        except Exception:
            # pl.Buffered(1) / pipeline_mode unsupported in this JAX build:
            # fall back to the default double-buffered constant-index table spec.
            out_flat = run(False)
    else:
        out_flat = run(False)

    return out_flat[:n_tokens].reshape(batch, seq, d_model)


def make_embedding_table(key, vocab_size, d_model):
    # nn.Embedding default init: N(0, 1); padding_idx=0 row zeroed.
    table = jax.random.normal(key, (vocab_size, d_model), dtype=jnp.float32)
    table = table.at[0].set(0.0)
    return table


if __name__ == "__main__":
    key = jax.random.PRNGKey(0)
    k_tab, k_idx = jax.random.split(key)

    vocab_size = 32
    d_model = 128
    batch, seq = 2, 8

    table = make_embedding_table(k_tab, vocab_size, d_model)
    # include padding (id 0) tokens among the draws to exercise the zero row
    x = jax.random.randint(k_idx, (batch, seq), minval=0, maxval=vocab_size,
                           dtype=jnp.int32)

    out = embedder_forward(x, table)
    out = jax.block_until_ready(out)

    # reference check (plain JAX gather == PyTorch embedding forward)
    ref = jnp.take(table, x.astype(jnp.int32), axis=0)
    assert out.shape == (batch, seq, d_model)
    assert jnp.allclose(out, ref, atol=1e-6), "mismatch vs reference gather"

    print("KERNEL_OK")
</pallas_src>

<mosaic_0001>
module attributes {stable_mosaic.version = 11 : i64} {
  func.func @_embed_onehot_kernel(%arg0: i32, %arg1: memref<256x1xi32, #tpu.memory_space<vmem>>, %arg2: memref<256x128xbf16, #tpu.memory_space<vmem>>, %arg3: memref<256x128xbf16, #tpu.memory_space<vmem>>, %arg4: memref<256x128xbf16, #tpu.memory_space<vmem>>, %arg5: memref<256x128xf32, #tpu.memory_space<vmem>>) attributes {dimension_semantics = [#tpu.dimension_semantics<parallel>], iteration_bounds = array<i64: 1>, scalar_prefetch = 0 : i64, scratch_operands = 0 : i64, tpu.core_type = #tpu.core_type<tc>, window_params = [{transform_indices = @transform_0, window_bounds = array<i64: 256, 1>}, {pipeline_mode = #tpu.pipeline_mode<synchronous>, transform_indices = @transform_1, window_bounds = array<i64: 256, 128>}, {pipeline_mode = #tpu.pipeline_mode<synchronous>, transform_indices = @transform_2, window_bounds = array<i64: 256, 128>}, {pipeline_mode = #tpu.pipeline_mode<synchronous>, transform_indices = @transform_3, window_bounds = array<i64: 256, 128>}, {transform_indices = @transform_4, window_bounds = array<i64: 256, 128>}]} {
    %c0 = arith.constant 0 : index
    %c0_0 = arith.constant 0 : index
    %0 = vector.load %arg1[%c0, %c0_0] : memref<256x1xi32, #tpu.memory_space<vmem>>, vector<256x1xi32>
    %cst = arith.constant 0.000000e+00 : f32
    %1 = vector.broadcast %cst : f32 to vector<256x128xf32>
    %2 = tpu.iota {dimensions = array<i32: 1>} : vector<256x256xi32>
    %c0_i32 = arith.constant 0 : i32
    %3 = vector.broadcast %c0_i32 : i32 to vector<256x256xi32>
    %4 = arith.addi %2, %3 : vector<256x256xi32>
    %5 = vector.broadcast %0 : vector<256x1xi32> to vector<256x256xi32>
    %6 = arith.cmpi eq, %4, %5 : vector<256x256xi32>
    %7 = arith.extui %6 : vector<256x256xi1> to vector<256x256xi32>
    %8 = arith.sitofp %7 : vector<256x256xi32> to vector<256x256xf32>
    %9 = arith.truncf %8 : vector<256x256xf32> to vector<256x256xbf16>
    %c0_1 = arith.constant 0 : index
    %c0_2 = arith.constant 0 : index
    %10 = vector.load %arg2[%c0_1, %c0_2] : memref<256x128xbf16, #tpu.memory_space<vmem>>, vector<256x128xbf16>
    %cst_3 = arith.constant dense<0.000000e+00> : vector<256x128xf32>
    %11 = tpu.matmul %9, %10, %cst_3 {dimension_numbers = #tpu.dot_dimension_numbers<[1], [0], [0], [1], [0, 0, 1, 1], [], []>} : vector<256x256xbf16>, vector<256x128xbf16>, vector<256x128xf32> -> vector<256x128xf32>
    %12 = arith.addf %1, %11 : vector<256x128xf32>
    %c0_4 = arith.constant 0 : index
    %c0_5 = arith.constant 0 : index
    %13 = vector.load %arg3[%c0_4, %c0_5] : memref<256x128xbf16, #tpu.memory_space<vmem>>, vector<256x128xbf16>
    %cst_6 = arith.constant dense<0.000000e+00> : vector<256x128xf32>
    %14 = tpu.matmul %9, %13, %cst_6 {dimension_numbers = #tpu.dot_dimension_numbers<[1], [0], [0], [1], [0, 0, 1, 1], [], []>} : vector<256x256xbf16>, vector<256x128xbf16>, vector<256x128xf32> -> vector<256x128xf32>
    %15 = arith.addf %12, %14 : vector<256x128xf32>
    %c0_7 = arith.constant 0 : index
    %c0_8 = arith.constant 0 : index
    %16 = vector.load %arg4[%c0_7, %c0_8] : memref<256x128xbf16, #tpu.memory_space<vmem>>, vector<256x128xbf16>
    %cst_9 = arith.constant dense<0.000000e+00> : vector<256x128xf32>
    %17 = tpu.matmul %9, %16, %cst_9 {dimension_numbers = #tpu.dot_dimension_numbers<[1], [0], [0], [1], [0, 0, 1, 1], [], []>} : vector<256x256xbf16>, vector<256x128xbf16>, vector<256x128xf32> -> vector<256x128xf32>
    %18 = arith.addf %15, %17 : vector<256x128xf32>
    %c0_10 = arith.constant 0 : index
    %c0_11 = arith.constant 0 : index
    %19 = vector.load %arg5[%c0_10, %c0_11] : memref<256x128xf32, #tpu.memory_space<vmem>>, vector<256x128xf32>
    tpu.vector_store %arg5[%c0_10, %c0_11], %18 {strides = array<i32>} : memref<256x128xf32, #tpu.memory_space<vmem>>, vector<256x128xf32>,
    return
  }
  func.func @transform_0(%arg0: i32) -> (i32, i32) {
    %c0_i32 = arith.constant 0 : i32
    %c0_i32_0 = arith.constant 0 : i32
    return %arg0, %c0_i32 : i32, i32
  }
  func.func @transform_1(%arg0: i32) -> (i32, i32) {
    %c0_i32 = arith.constant 0 : i32
    %c0_i32_0 = arith.constant 0 : i32
    %c0_i32_1 = arith.constant 0 : i32
    return %c0_i32, %c0_i32_0 : i32, i32
  }
  func.func @transform_2(%arg0: i32) -> (i32, i32) {
    %c0_i32 = arith.constant 0 : i32
    %c0_i32_0 = arith.constant 0 : i32
    %c0_i32_1 = arith.constant 0 : i32
    return %c0_i32, %c0_i32_0 : i32, i32
  }
  func.func @transform_3(%arg0: i32) -> (i32, i32) {
    %c0_i32 = arith.constant 0 : i32
    %c0_i32_0 = arith.constant 0 : i32
    %c0_i32_1 = arith.constant 0 : i32
    return %c0_i32, %c0_i32_0 : i32, i32
  }
  func.func @transform_4(%arg0: i32) -> (i32, i32) {
    %c0_i32 = arith.constant 0 : i32
    %c0_i32_0 = arith.constant 0 : i32
    return %arg0, %c0_i32 : i32, i32
  }
}

module attributes {stable_mosaic.version = 11 : i64} {
  func.func @_embed_onehot_kernel(%arg0: i32, %arg1: memref<256x1xi32, #tpu.memory_space<vmem>>, %arg2: memref<256x128xbf16, #tpu.memory_space<vmem>>, %arg3: memref<256x128xbf16, #tpu.memory_space<vmem>>, %arg4: memref<256x128xbf16, #tpu.memory_space<vmem>>, %arg5: memref<256x128xf32, #tpu.memory_space<vmem>>) attributes {dimension_semantics = [#tpu.dimension_semantics<parallel>], iteration_bounds = array<i64: 1>, scalar_prefetch = 0 : i64, scratch_operands = 0 : i64, tpu.core_type = #tpu.core_type<tc>, window_params = [{transform_indices = @transform_0, window_bounds = array<i64: 256, 1>}, {pipeline_mode = #tpu.pipeline_mode<synchronous>, transform_indices = @transform_1, window_bounds = array<i64: 256, 128>}, {pipeline_mode = #tpu.pipeline_mode<synchronous>, transform_indices = @transform_2, window_bounds = array<i64: 256, 128>}, {pipeline_mode = #tpu.pipeline_mode<synchronous>, transform_indices = @transform_3, window_bounds = array<i64: 256, 128>}, {transform_indices = @transform_4, window_bounds = array<i64: 256, 128>}]} {
    %c0 = arith.constant 0 : index
    %c0_0 = arith.constant 0 : index
    %0 = vector.load %arg1[%c0, %c0_0] : memref<256x1xi32, #tpu.memory_space<vmem>>, vector<256x1xi32>
    %cst = arith.constant 0.000000e+00 : f32
    %1 = vector.broadcast %cst : f32 to vector<256x128xf32>
    %2 = tpu.iota {dimensions = array<i32: 1>} : vector<256x256xi32>
    %c0_i32 = arith.constant 0 : i32
    %3 = vector.broadcast %c0_i32 : i32 to vector<256x256xi32>
    %4 = arith.addi %2, %3 : vector<256x256xi32>
    %5 = vector.broadcast %0 : vector<256x1xi32> to vector<256x256xi32>
    %6 = arith.cmpi eq, %4, %5 : vector<256x256xi32>
    %7 = arith.extui %6 : vector<256x256xi1> to vector<256x256xi32>
    %8 = arith.sitofp %7 : vector<256x256xi32> to vector<256x256xf32>
    %9 = arith.truncf %8 : vector<256x256xf32> to vector<256x256xbf16>
    %c0_1 = arith.constant 0 : index
    %c0_2 = arith.constant 0 : index
    %10 = vector.load %arg2[%c0_1, %c0_2] : memref<256x128xbf16, #tpu.memory_space<vmem>>, vector<256x128xbf16>
    %cst_3 = arith.constant dense<0.000000e+00> : vector<256x128xf32>
    %11 = tpu.matmul %9, %10, %cst_3 {dimension_numbers = #tpu.dot_dimension_numbers<[1], [0], [0], [1], [0, 0, 1, 1], [], []>} : vector<256x256xbf16>, vector<256x128xbf16>, vector<256x128xf32> -> vector<256x128xf32>
    %12 = arith.addf %1, %11 : vector<256x128xf32>
    %c0_4 = arith.constant 0 : index
    %c0_5 = arith.constant 0 : index
    %13 = vector.load %arg3[%c0_4, %c0_5] : memref<256x128xbf16, #tpu.memory_space<vmem>>, vector<256x128xbf16>
    %cst_6 = arith.constant dense<0.000000e+00> : vector<256x128xf32>
    %14 = tpu.matmul %9, %13, %cst_6 {dimension_numbers = #tpu.dot_dimension_numbers<[1], [0], [0], [1], [0, 0, 1, 1], [], []>} : vector<256x256xbf16>, vector<256x128xbf16>, vector<256x128xf32> -> vector<256x128xf32>
    %15 = arith.addf %12, %14 : vector<256x128xf32>
    %c0_7 = arith.constant 0 : index
    %c0_8 = arith.constant 0 : index
    %16 = vector.load %arg4[%c0_7, %c0_8] : memref<256x128xbf16, #tpu.memory_space<vmem>>, vector<256x128xbf16>
    %cst_9 = arith.constant dense<0.000000e+00> : vector<256x128xf32>
    %17 = tpu.matmul %9, %16, %cst_9 {dimension_numbers = #tpu.dot_dimension_numbers<[1], [0], [0], [1], [0, 0, 1, 1], [], []>} : vector<256x256xbf16>, vector<256x128xbf16>, vector<256x128xf32> -> vector<256x128xf32>
    %18 = arith.addf %15, %17 : vector<256x128xf32>
    %c0_10 = arith.constant 0 : index
    %c0_11 = arith.constant 0 : index
    %19 = vector.load %arg5[%c0_10, %c0_11] : memref<256x128xf32, #tpu.memory_space<vmem>>, vector<256x128xf32>
    tpu.vector_store %arg5[%c0_10, %c0_11], %18 {strides = array<i32>} : memref<256x128xf32, #tpu.memory_space<vmem>>, vector<256x128xf32>,
    return
  }
  func.func @transform_0(%arg0: i32) -> (i32, i32) {
    %c0_i32 = arith.constant 0 : i32
    %c0_i32_0 = arith.constant 0 : i32
    return %arg0, %c0_i32 : i32, i32
  }
  func.func @transform_1(%arg0: i32) -> (i32, i32) {
    %c0_i32 = arith.constant 0 : i32
    %c0_i32_0 = arith.constant 0 : i32
    %c0_i32_1 = arith.constant 0 : i32
    return %c0_i32, %c0_i32_0 : i32, i32
  }
  func.func @transform_2(%arg0: i32) -> (i32, i32) {
    %c0_i32 = arith.constant 0 : i32
    %c0_i32_0 = arith.constant 0 : i32
    %c0_i32_1 = arith.constant 0 : i32
    return %c0_i32, %c0_i32_0 : i32, i32
  }
  func.func @transform_3(%arg0: i32) -> (i32, i32) {
    %c0_i32 = arith.constant 0 : i32
    %c0_i32_0 = arith.constant 0 : i32
    %c0_i32_1 = arith.constant 0 : i32
    return %c0_i32, %c0_i32_0 : i32, i32
  }
  func.func @transform_4(%arg0: i32) -> (i32, i32) {
    %c0_i32 = arith.constant 0 : i32
    %c0_i32_0 = arith.constant 0 : i32
    return %arg0, %c0_i32 : i32, i32
  }
}

</mosaic_0001>

<llo_original>
// kernel: tpu_custom_call.1
$region0: #{tpu_custom_call.1}
  #allocation0 [shape = 'u32[]', space=smem, size = 0x4, offset = 0x4, fixed_abs, tag = 'smem constant byte address 0x4 - core index']
  #allocation1 [shape = 'u32[144,128]{1,0:T(1,128)}', space=vmem, size = 0x12000, scoped, tag = 'internal scratch']
  %s0 = inlined_call_operand.vmem [shape: s32[256,1], index: 0, kind: input, shape index: {}]
  %s1 = inlined_call_operand.vmem [shape: bf16[256,128], index: 1, kind: input, shape index: {}]
  %s2 = inlined_call_operand.vmem [shape: bf16[256,128], index: 2, kind: input, shape index: {}]
  %s3 = inlined_call_operand.hbm [shape: bf16[256,128], index: 3, kind: input, shape index: {}]
  %s4 = inlined_call_operand.hbm [shape: f32[256,128], index: 4, kind: output, shape index: {}]
  %s5 = sld [smem:[#allocation0]]
  $region30: #{tpu_custom_call.1} parent=0
    _
  %s7 = ssub.s32 1, %s5
  %s8 = scalar_select 0, %s7, %s5
  $region1: #{tpu_custom_call.1} parent=0
    #allocation2 [shape = 'u8[65536]{0}', space=vmem, size = 0x10000, scoped, tag = 'input window, operand 3, single buffered']
    #allocation3 [shape = 's32[1]{0}', space=sflag, size = 0x4, scoped, tag = 'scoped memory for tpu_custom_call.1']
    #allocation4 [shape = 's32[1]{0}', space=sflag, size = 0x4, scoped, tag = 'scoped memory for tpu_custom_call.1']
    #allocation5 [shape = 'u8[131072]{0}', space=vmem, size = 0x20000, scoped, tag = 'output window, operand 0, single buffered']
    %9 = vsyncpa [#allocation3], 0
    %10 = vsyncpa [#allocation4], 0
    // Predicated region
    $region2: #{tpu_custom_call.1} parent=1 // pred_check
      _
    $region3: #{tpu_custom_call.1} parent=1 // pred_check_branch
      %12 = sbr.rel (0) target = $region5
    $region4: #{tpu_custom_call.1} parent=1 // pred_region
      _
    $region5: #{tpu_custom_call.1} parent=1 // pred_fallthru
      _
    // Predicated region
    $region6: #{tpu_custom_call.1} parent=1 // pred_check
      _
    $region7: #{tpu_custom_call.1} parent=1 // pred_check_branch
      %14 = sbr.rel (0) target = $region9
    $region8: #{tpu_custom_call.1} parent=1 // pred_region
      _
    $region9: #{tpu_custom_call.1} parent=1 // pred_fallthru
      _
    // Predicated region
    $region10: #{tpu_custom_call.1} parent=1 // pred_check
      _
    $region11: #{tpu_custom_call.1} parent=1 // pred_check_branch
      %16 = sbr.rel (0) target = $region13
    $region12: #{tpu_custom_call.1} parent=1 // pred_region
      _
    $region13: #{tpu_custom_call.1} parent=1 // pred_fallthru
      _
    // Predicated region
    $region14: #{tpu_custom_call.1} parent=1 // pred_check
      _
    $region15: #{tpu_custom_call.1} parent=1 // pred_check_branch
      %18 = sbr.rel (0) target = $region17
    $region16: #{tpu_custom_call.1} parent=1 // pred_region
      %s20 = ssub.s32 2048, 2048
      %21 = vsyncadd [#allocation3], %s20
      %s22 = sshll.u32 [#allocation2], 4
      %s23 = int_to_ptr.vmem [resolvable:$true] %s22
      %28 = dma.hbm_to_vmem [thread:$0]  %s3, 2048, %s23, [#allocation3], 64, 64, 4
    $region17: #{tpu_custom_call.1} parent=1 // pred_fallthru
      _
    // Predicated region
    $region18: #{tpu_custom_call.1} parent=1 // pred_check
      _
    $region19: #{tpu_custom_call.1} parent=1 // pred_check_branch
      %30 = sbr.rel (0) target = $region21
    $region20: #{tpu_custom_call.1} parent=1 // pred_region
      %31 = dma.done [#allocation3], 2048
    $region21: #{tpu_custom_call.1} parent=1 // pred_fallthru
      _
    %v33 = vld [vmem:[%s0] sm:$0xff]
    %v34 = vld [vmem:[%s0 + $0x8] sm:$0xff]
    %v35 = vld [vmem:[%s0 + $0x10] sm:$0xff]
    %v36 = vld [vmem:[%s0 + $0x18] sm:$0xff]
    %v37 = vld [vmem:[%s0 + $0x20] sm:$0xff]
    %v38 = vld [vmem:[%s0 + $0x28] sm:$0xff]
    %v39 = vld [vmem:[%s0 + $0x30] sm:$0xff]
    %v40 = vld [vmem:[%s0 + $0x38] sm:$0xff]
    %v41 = vld [vmem:[%s0 + $0x40] sm:$0xff]
    %v42 = vld [vmem:[%s0 + $0x48] sm:$0xff]
    %v43 = vld [vmem:[%s0 + $0x50] sm:$0xff]
    %v44 = vld [vmem:[%s0 + $0x58] sm:$0xff]
    %v45 = vld [vmem:[%s0 + $0x60] sm:$0xff]
    %v46 = vld [vmem:[%s0 + $0x68] sm:$0xff]
    %v47 = vld [vmem:[%s0 + $0x70] sm:$0xff]
    %v48 = vld [vmem:[%s0 + $0x78] sm:$0xff]
    %v49 = vld [vmem:[%s0 + $0x80] sm:$0xff]
    %v50 = vld [vmem:[%s0 + $0x88] sm:$0xff]
    %v51 = vld [vmem:[%s0 + $0x90] sm:$0xff]
    %v52 = vld [vmem:[%s0 + $0x98] sm:$0xff]
    %v53 = vld [vmem:[%s0 + $0xa0] sm:$0xff]
    %v54 = vld [vmem:[%s0 + $0xa8] sm:$0xff]
    %v55 = vld [vmem:[%s0 + $0xb0] sm:$0xff]
    %v56 = vld [vmem:[%s0 + $0xb8] sm:$0xff]
    %v57 = vld [vmem:[%s0 + $0xc0] sm:$0xff]
    %v58 = vld [vmem:[%s0 + $0xc8] sm:$0xff]
    %v59 = vld [vmem:[%s0 + $0xd0] sm:$0xff]
    %v60 = vld [vmem:[%s0 + $0xd8] sm:$0xff]
    %v61 = vld [vmem:[%s0 + $0xe0] sm:$0xff]
    %v62 = vld [vmem:[%s0 + $0xe8] sm:$0xff]
    %v63 = vld [vmem:[%s0 + $0xf0] sm:$0xff]
    %v64 = vld [vmem:[%s0 + $0xf8] sm:$0xff]
    %v65 = vlaneseq
    %v66 = vand.u32 %v65, 127
    %v67 = vadd.s32 %v66, 128
    %68 = vset.pattern.permute.xlu0 0
    %69 = vperm.xlu0 %68, %v33
    %v70 = vpop.permute.xlu0 %69
    %71 = vset.pattern.permute.xlu0 0
    %72 = vperm.xlu0 %71, %v34
    %v73 = vpop.permute.xlu0 %72
    %74 = vset.pattern.permute.xlu0 0
    %75 = vperm.xlu0 %74, %v35
    %v76 = vpop.permute.xlu0 %75
    %77 = vset.pattern.permute.xlu0 0
    %78 = vperm.xlu0 %77, %v36
    %v79 = vpop.permute.xlu0 %78
    %80 = vset.pattern.permute.xlu0 0
    %81 = vperm.xlu0 %80, %v37
    %v82 = vpop.permute.xlu0 %81
    %83 = vset.pattern.permute.xlu0 0
    %84 = vperm.xlu0 %83, %v38
    %v85 = vpop.permute.xlu0 %84
    %86 = vset.pattern.permute.xlu0 0
    %87 = vperm.xlu0 %86, %v39
    %v88 = vpop.permute.xlu0 %87
    %89 = vset.pattern.permute.xlu0 0
    %90 = vperm.xlu0 %89, %v40
    %v91 = vpop.permute.xlu0 %90
    %92 = vset.pattern.permute.xlu0 0
    %93 = vperm.xlu0 %92, %v41
    %v94 = vpop.permute.xlu0 %93
    %95 = vset.pattern.permute.xlu0 0
    %96 = vperm.xlu0 %95, %v42
    %v97 = vpop.permute.xlu0 %96
    %98 = vset.pattern.permute.xlu0 0
    %99 = vperm.xlu0 %98, %v43
    %v100 = vpop.permute.xlu0 %99
    %101 = vset.pattern.permute.xlu0 0
    %102 = vperm.xlu0 %101, %v44
    %v103 = vpop.permute.xlu0 %102
    %104 = vset.pattern.permute.xlu0 0
    %105 = vperm.xlu0 %104, %v45
    %v106 = vpop.permute.xlu0 %105
    %107 = vset.pattern.permute.xlu0 0
    %108 = vperm.xlu0 %107, %v46
    %v109 = vpop.permute.xlu0 %108
    %110 = vset.pattern.permute.xlu0 0
    %111 = vperm.xlu0 %110, %v47
    %v112 = vpop.permute.xlu0 %111
    %113 = vset.pattern.permute.xlu0 0
    %114 = vperm.xlu0 %113, %v48
    %v115 = vpop.permute.xlu0 %114
    %116 = vset.pattern.permute.xlu0 0
    %117 = vperm.xlu0 %116, %v49
    %v118 = vpop.permute.xlu0 %117
    %119 = vset.pattern.permute.xlu0 0
    %120 = vperm.xlu0 %119, %v50
    %v121 = vpop.permute.xlu0 %120
    %122 = vset.pattern.permute.xlu0 0
    %123 = vperm.xlu0 %122, %v51
    %v124 = vpop.permute.xlu0 %123
    %125 = vset.pattern.permute.xlu0 0
    %126 = vperm.xlu0 %125, %v52
    %v127 = vpop.permute.xlu0 %126
    %128 = vset.pattern.permute.xlu0 0
    %129 = vperm.xlu0 %128, %v53
    %v130 = vpop.permute.xlu0 %129
    %131 = vset.pattern.permute.xlu0 0
    %132 = vperm.xlu0 %131, %v54
    %v133 = vpop.permute.xlu0 %132
    %134 = vset.pattern.permute.xlu0 0
    %135 = vperm.xlu0 %134, %v55
    %v136 = vpop.permute.xlu0 %135
    %137 = vset.pattern.permute.xlu0 0
    %138 = vperm.xlu0 %137, %v56
    %v139 = vpop.permute.xlu0 %138
    %140 = vset.pattern.permute.xlu0 0
    %141 = vperm.xlu0 %140, %v57
    %v142 = vpop.permute.xlu0 %141
    %143 = vset.pattern.permute.xlu0 0
    %144 = vperm.xlu0 %143, %v58
    %v145 = vpop.permute.xlu0 %144
    %146 = vset.pattern.permute.xlu0 0
    %147 = vperm.xlu0 %146, %v59
    %v148 = vpop.permute.xlu0 %147
    %149 = vset.pattern.permute.xlu0 0
    %150 = vperm.xlu0 %149, %v60
    %v151 = vpop.permute.xlu0 %150
    %152 = vset.pattern.permute.xlu0 0
    %153 = vperm.xlu0 %152, %v61
    %v154 = vpop.permute.xlu0 %153
    %155 = vset.pattern.permute.xlu0 0
    %156 = vperm.xlu0 %155, %v62
    %v157 = vpop.permute.xlu0 %156
    %158 = vset.pattern.permute.xlu0 0
    %159 = vperm.xlu0 %158, %v63
    %v160 = vpop.permute.xlu0 %159
    %161 = vset.pattern.permute.xlu0 0
    %162 = vperm.xlu0 %161, %v64
    %v163 = vpop.permute.xlu0 %162
    %vm164 = vcmp.eq.s32.totalorder %v66, %v70
    %vm165 = vcmp.eq.s32.totalorder %v67, %v70
    %vm166 = vcmp.eq.s32.totalorder %v66, %v73
    %vm167 = vcmp.eq.s32.totalorder %v67, %v73
    %vm168 = vcmp.eq.s32.totalorder %v66, %v76
    %vm169 = vcmp.eq.s32.totalorder %v67, %v76
    %vm170 = vcmp.eq.s32.totalorder %v66, %v79
    %vm171 = vcmp.eq.s32.totalorder %v67, %v79
    %vm172 = vcmp.eq.s32.totalorder %v66, %v82
    %vm173 = vcmp.eq.s32.totalorder %v67, %v82
    %vm174 = vcmp.eq.s32.totalorder %v66, %v85
    %vm175 = vcmp.eq.s32.totalorder %v67, %v85
    %vm176 = vcmp.eq.s32.totalorder %v66, %v88
    %vm177 = vcmp.eq.s32.totalorder %v67, %v88
    %vm178 = vcmp.eq.s32.totalorder %v66, %v91
    %vm179 = vcmp.eq.s32.totalorder %v67, %v91
    %vm180 = vcmp.eq.s32.totalorder %v66, %v94
    %vm181 = vcmp.eq.s32.totalorder %v67, %v94
    %vm182 = vcmp.eq.s32.totalorder %v66, %v97
    %vm183 = vcmp.eq.s32.totalorder %v67, %v97
    %vm184 = vcmp.eq.s32.totalorder %v66, %v100
    %vm185 = vcmp.eq.s32.totalorder %v67, %v100
    %vm186 = vcmp.eq.s32.totalorder %v66, %v103
    %vm187 = vcmp.eq.s32.totalorder %v67, %v103
    %vm188 = vcmp.eq.s32.totalorder %v66, %v106
    %vm189 = vcmp.eq.s32.totalorder %v67, %v106
    %vm190 = vcmp.eq.s32.totalorder %v66, %v109
    %vm191 = vcmp.eq.s32.totalorder %v67, %v109
    %vm192 = vcmp.eq.s32.totalorder %v66, %v112
    %vm193 = vcmp.eq.s32.totalorder %v67, %v112
    %vm194 = vcmp.eq.s32.totalorder %v66, %v115
    %vm195 = vcmp.eq.s32.totalorder %v67, %v115
    %vm196 = vcmp.eq.s32.totalorder %v66, %v118
    %vm197 = vcmp.eq.s32.totalorder %v67, %v118
    %vm198 = vcmp.eq.s32.totalorder %v66, %v121
    %vm199 = vcmp.eq.s32.totalorder %v67, %v121
    %vm200 = vcmp.eq.s32.totalorder %v66, %v124
    %vm201 = vcmp.eq.s32.totalorder %v67, %v124
    %vm202 = vcmp.eq.s32.totalorder %v66, %v127
    %vm203 = vcmp.eq.s32.totalorder %v67, %v127
    %vm204 = vcmp.eq.s32.totalorder %v66, %v130
    %vm205 = vcmp.eq.s32.totalorder %v67, %v130
    %vm206 = vcmp.eq.s32.totalorder %v66, %v133
    %vm207 = vcmp.eq.s32.totalorder %v67, %v133
    %vm208 = vcmp.eq.s32.totalorder %v66, %v136
    %vm209 = vcmp.eq.s32.totalorder %v67, %v136
    %vm210 = vcmp.eq.s32.totalorder %v66, %v139
    %vm211 = vcmp.eq.s32.totalorder %v67, %v139
    %vm212 = vcmp.eq.s32.totalorder %v66, %v142
    %vm213 = vcmp.eq.s32.totalorder %v67, %v142
    %vm214 = vcmp.eq.s32.totalorder %v66, %v145
    %vm215 = vcmp.eq.s32.totalorder %v67, %v145
    %vm216 = vcmp.eq.s32.totalorder %v66, %v148
    %vm217 = vcmp.eq.s32.totalorder %v67, %v148
    %vm218 = vcmp.eq.s32.totalorder %v66, %v151
    %vm219 = vcmp.eq.s32.totalorder %v67, %v151
    %vm220 = vcmp.eq.s32.totalorder %v66, %v154
    %vm221 = vcmp.eq.s32.totalorder %v67, %v154
    %vm222 = vcmp.eq.s32.totalorder %v66, %v157
    %vm223 = vcmp.eq.s32.totalorder %v67, %v157
    %vm224 = vcmp.eq.s32.totalorder %v66, %v160
    %vm225 = vcmp.eq.s32.totalorder %v67, %v160
    %vm226 = vcmp.eq.s32.totalorder %v66, %v163
    %vm227 = vcmp.eq.s32.totalorder %v67, %v163
    %v228 = vsel %vm164, 1, 0
    %v229 = vsel %vm165, 1, 0
    %v230 = vsel %vm166, 1, 0
    %v231 = vsel %vm167, 1, 0
    %v232 = vsel %vm168, 1, 0
    %v233 = vsel %vm169, 1, 0
    %v234 = vsel %vm170, 1, 0
    %v235 = vsel %vm171, 1, 0
    %v236 = vsel %vm172, 1, 0
    %v237 = vsel %vm173, 1, 0
    %v238 = vsel %vm174, 1, 0
    %v239 = vsel %vm175, 1, 0
    %v240 = vsel %vm176, 1, 0
    %v241 = vsel %vm177, 1, 0
    %v242 = vsel %vm178, 1, 0
    %v243 = vsel %vm179, 1, 0
    %v244 = vsel %vm180, 1, 0
    %v245 = vsel %vm181, 1, 0
    %v246 = vsel %vm182, 1, 0
    %v247 = vsel %vm183, 1, 0
    %v248 = vsel %vm184, 1, 0
    %v249 = vsel %vm185, 1, 0
    %v250 = vsel %vm186, 1, 0
    %v251 = vsel %vm187, 1, 0
    %v252 = vsel %vm188, 1, 0
    %v253 = vsel %vm189, 1, 0
    %v254 = vsel %vm190, 1, 0
    %v255 = vsel %vm191, 1, 0
    %v256 = vsel %vm192, 1, 0
    %v257 = vsel %vm193, 1, 0
    %v258 = vsel %vm194, 1, 0
    %v259 = vsel %vm195, 1, 0
    %v260 = vsel %vm196, 1, 0
    %v261 = vsel %vm197, 1, 0
    %v262 = vsel %vm198, 1, 0
    %v263 = vsel %vm199, 1, 0
    %v264 = vsel %vm200, 1, 0
    %v265 = vsel %vm201, 1, 0
    %v266 = vsel %vm202, 1, 0
    %v267 = vsel %vm203, 1, 0
    %v268 = vsel %vm204, 1, 0
    %v269 = vsel %vm205, 1, 0
    %v270 = vsel %vm206, 1, 0
    %v271 = vsel %vm207, 1, 0
    %v272 = vsel %vm208, 1, 0
    %v273 = vsel %vm209, 1, 0
    %v274 = vsel %vm210, 1, 0
    %v275 = vsel %vm211, 1, 0
    %v276 = vsel %vm212, 1, 0
    %v277 = vsel %vm213, 1, 0
    %v278 = vsel %vm214, 1, 0
    %v279 = vsel %vm215, 1, 0
    %v280 = vsel %vm216, 1, 0
    %v281 = vsel %vm217, 1, 0
    %v282 = vsel %vm218, 1, 0
    %v283 = vsel %vm219, 1, 0
    %v284 = vsel %vm220, 1, 0
    %v285 = vsel %vm221, 1, 0
    %v286 = vsel %vm222, 1, 0
    %v287 = vsel %vm223, 1, 0
    %v288 = vsel %vm224, 1, 0
    %v289 = vsel %vm225, 1, 0
    %v290 = vsel %vm226, 1, 0
    %v291 = vsel %vm227, 1, 0
    %v292 = vcvt.s32.f32 %v228
    %v293 = vcvt.s32.f32 %v229
    %v294 = vcvt.s32.f32 %v230
    %v295 = vcvt.s32.f32 %v231
    %v296 = vcvt.s32.f32 %v232
    %v297 = vcvt.s32.f32 %v233
    %v298 = vcvt.s32.f32 %v234
    %v299 = vcvt.s32.f32 %v235
    %v300 = vcvt.s32.f32 %v236
    %v301 = vcvt.s32.f32 %v237
    %v302 = vcvt.s32.f32 %v238
    %v303 = vcvt.s32.f32 %v239
    %v304 = vcvt.s32.f32 %v240
    %v305 = vcvt.s32.f32 %v241
    %v306 = vcvt.s32.f32 %v242
    %v307 = vcvt.s32.f32 %v243
    %v308 = vcvt.s32.f32 %v244
    %v309 = vcvt.s32.f32 %v245
    %v310 = vcvt.s32.f32 %v246
    %v311 = vcvt.s32.f32 %v247
    %v312 = vcvt.s32.f32 %v248
    %v313 = vcvt.s32.f32 %v249
    %v314 = vcvt.s32.f32 %v250
    %v315 = vcvt.s32.f32 %v251
    %v316 = vcvt.s32.f32 %v252
    %v317 = vcvt.s32.f32 %v253
    %v318 = vcvt.s32.f32 %v254
    %v319 = vcvt.s32.f32 %v255
    %v320 = vcvt.s32.f32 %v256
    %v321 = vcvt.s32.f32 %v257
    %v322 = vcvt.s32.f32 %v258
    %v323 = vcvt.s32.f32 %v259
    %v324 = vcvt.s32.f32 %v260
    %v325 = vcvt.s32.f32 %v261
    %v326 = vcvt.s32.f32 %v262
    %v327 = vcvt.s32.f32 %v263
    %v328 = vcvt.s32.f32 %v264
    %v329 = vcvt.s32.f32 %v265
    %v330 = vcvt.s32.f32 %v266
    %v331 = vcvt.s32.f32 %v267
    %v332 = vcvt.s32.f32 %v268
    %v333 = vcvt.s32.f32 %v269
    %v334 = vcvt.s32.f32 %v270
    %v335 = vcvt.s32.f32 %v271
    %v336 = vcvt.s32.f32 %v272
    %v337 = vcvt.s32.f32 %v273
    %v338 = vcvt.s32.f32 %v274
    %v339 = vcvt.s32.f32 %v275
    %v340 = vcvt.s32.f32 %v276
    %v341 = vcvt.s32.f32 %v277
    %v342 = vcvt.s32.f32 %v278
    %v343 = vcvt.s32.f32 %v279
    %v344 = vcvt.s32.f32 %v280
    %v345 = vcvt.s32.f32 %v281
    %v346 = vcvt.s32.f32 %v282
    %v347 = vcvt.s32.f32 %v283
    %v348 = vcvt.s32.f32 %v284
    %v349 = vcvt.s32.f32 %v285
    %v350 = vcvt.s32.f32 %v286
    %v351 = vcvt.s32.f32 %v287
    %v352 = vcvt.s32.f32 %v288
    %v353 = vcvt.s32.f32 %v289
    %v354 = vcvt.s32.f32 %v290
    %v355 = vcvt.s32.f32 %v291
    %v356 = vpack.c.bf16 %v294, %v292
    %v357 = vpack.c.bf16 %v295, %v293
    %v358 = vpack.c.bf16 %v298, %v296
    %v359 = vpack.c.bf16 %v299, %v297
    %v360 = vpack.c.bf16 %v302, %v300
    %v361 = vpack.c.bf16 %v303, %v301
    %v362 = vpack.c.bf16 %v306, %v304
    %v363 = vpack.c.bf16 %v307, %v305
    %v364 = vpack.c.bf16 %v310, %v308
    %v365 = vpack.c.bf16 %v311, %v309
    %v366 = vpack.c.bf16 %v314, %v312
    %v367 = vpack.c.bf16 %v315, %v313
    %v368 = vpack.c.bf16 %v318, %v316
    %v369 = vpack.c.bf16 %v319, %v317
    %v370 = vpack.c.bf16 %v322, %v320
    %v371 = vpack.c.bf16 %v323, %v321
    %v372 = vpack.c.bf16 %v326, %v324
    %v373 = vpack.c.bf16 %v327, %v325
    %v374 = vpack.c.bf16 %v330, %v328
    %v375 = vpack.c.bf16 %v331, %v329
    %v376 = vpack.c.bf16 %v334, %v332
    %v377 = vpack.c.bf16 %v335, %v333
    %v378 = vpack.c.bf16 %v338, %v336
    %v379 = vpack.c.bf16 %v339, %v337
    %v380 = vpack.c.bf16 %v342, %v340
    %v381 = vpack.c.bf16 %v343, %v341
    %v382 = vpack.c.bf16 %v346, %v344
    %v383 = vpack.c.bf16 %v347, %v345
    %v384 = vpack.c.bf16 %v350, %v348
    %v385 = vpack.c.bf16 %v351, %v349
    %v386 = vpack.c.bf16 %v354, %v352
    %v387 = vpack.c.bf16 %v355, %v353
    %v388 = vld [vmem:[%s1] sm:$0xf]
    %v389 = vld [vmem:[%s1 + $0x4] sm:$0xf]
    %v390 = vld [vmem:[%s1 + $0x8] sm:$0xf]
    %v391 = vld [vmem:[%s1 + $0xc] sm:$0xf]
    %v392 = vld [vmem:[%s1 + $0x10] sm:$0xf]
    %v393 = vld [vmem:[%s1 + $0x14] sm:$0xf]
    %v394 = vld [vmem:[%s1 + $0x18] sm:$0xf]
    %v395 = vld [vmem:[%s1 + $0x1c] sm:$0xf]
    %v396 = vld [vmem:[%s1 + $0x20] sm:$0xf]
    %v397 = vld [vmem:[%s1 + $0x24] sm:$0xf]
    %v398 = vld [vmem:[%s1 + $0x28] sm:$0xf]
    %v399 = vld [vmem:[%s1 + $0x2c] sm:$0xf]
    %v400 = vld [vmem:[%s1 + $0x30] sm:$0xf]
    %v401 = vld [vmem:[%s1 + $0x34] sm:$0xf]
    %v402 = vld [vmem:[%s1 + $0x38] sm:$0xf]
    %v403 = vld [vmem:[%s1 + $0x3c] sm:$0xf]
    %v404 = vld [vmem:[%s1 + $0x40] sm:$0xf]
    %v405 = vld [vmem:[%s1 + $0x44] sm:$0xf]
    %v406 = vld [vmem:[%s1 + $0x48] sm:$0xf]
    %v407 = vld [vmem:[%s1 + $0x4c] sm:$0xf]
    %v408 = vld [vmem:[%s1 + $0x50] sm:$0xf]
    %v409 = vld [vmem:[%s1 + $0x54] sm:$0xf]
    %v410 = vld [vmem:[%s1 + $0x58] sm:$0xf]
    %v411 = vld [vmem:[%s1 + $0x5c] sm:$0xf]
    %v412 = vld [vmem:[%s1 + $0x60] sm:$0xf]
    %v413 = vld [vmem:[%s1 + $0x64] sm:$0xf]
    %v414 = vld [vmem:[%s1 + $0x68] sm:$0xf]
    %v415 = vld [vmem:[%s1 + $0x6c] sm:$0xf]
    %v416 = vld [vmem:[%s1 + $0x70] sm:$0xf]
    %v417 = vld [vmem:[%s1 + $0x74] sm:$0xf]
    %v418 = vld [vmem:[%s1 + $0x78] sm:$0xf]
    %v419 = vld [vmem:[%s1 + $0x7c] sm:$0xf]
    %v420 = vld [vmem:[%s2] sm:$0xf]
    %v421 = vld [vmem:[%s2 + $0x4] sm:$0xf]
    %v422 = vld [vmem:[%s2 + $0x8] sm:$0xf]
    %v423 = vld [vmem:[%s2 + $0xc] sm:$0xf]
    %v424 = vld [vmem:[%s2 + $0x10] sm:$0xf]
    %v425 = vld [vmem:[%s2 + $0x14] sm:$0xf]
    %v426 = vld [vmem:[%s2 + $0x18] sm:$0xf]
    %v427 = vld [vmem:[%s2 + $0x1c] sm:$0xf]
    %v428 = vld [vmem:[%s2 + $0x20] sm:$0xf]
    %v429 = vld [vmem:[%s2 + $0x24] sm:$0xf]
    %v430 = vld [vmem:[%s2 + $0x28] sm:$0xf]
    %v431 = vld [vmem:[%s2 + $0x2c] sm:$0xf]
    %v432 = vld [vmem:[%s2 + $0x30] sm:$0xf]
    %v433 = vld [vmem:[%s2 + $0x34] sm:$0xf]
    %v434 = vld [vmem:[%s2 + $0x38] sm:$0xf]
    %v435 = vld [vmem:[%s2 + $0x3c] sm:$0xf]
    %v436 = vld [vmem:[%s2 + $0x40] sm:$0xf]
    %v437 = vld [vmem:[%s2 + $0x44] sm:$0xf]
    %v438 = vld [vmem:[%s2 + $0x48] sm:$0xf]
    %v439 = vld [vmem:[%s2 + $0x4c] sm:$0xf]
    %v440 = vld [vmem:[%s2 + $0x50] sm:$0xf]
    %v441 = vld [vmem:[%s2 + $0x54] sm:$0xf]
    %v442 = vld [vmem:[%s2 + $0x58] sm:$0xf]
    %v443 = vld [vmem:[%s2 + $0x5c] sm:$0xf]
    %v444 = vld [vmem:[%s2 + $0x60] sm:$0xf]
    %v445 = vld [vmem:[%s2 + $0x64] sm:$0xf]
    %v446 = vld [vmem:[%s2 + $0x68] sm:$0xf]
    %v447 = vld [vmem:[%s2 + $0x6c] sm:$0xf]
    %v448 = vld [vmem:[%s2 + $0x70] sm:$0xf]
    %v449 = vld [vmem:[%s2 + $0x74] sm:$0xf]
    %v450 = vld [vmem:[%s2 + $0x78] sm:$0xf]
    %v451 = vld [vmem:[%s2 + $0x7c] sm:$0xf]
    %v484 = vunpack.c.l.b16 %v420
    %v485 = vunpack.c.l.b16 %v421
    %v486 = vunpack.c.l.b16 %v422
    %v487 = vunpack.c.l.b16 %v423
    %v488 = vunpack.c.l.b16 %v424
    %v489 = vunpack.c.l.b16 %v425
    %v490 = vunpack.c.l.b16 %v426
    %v491 = vunpack.c.l.b16 %v427
    %v492 = vunpack.c.l.b16 %v428
    %v493 = vunpack.c.l.b16 %v429
    %v494 = vunpack.c.l.b16 %v430
    %v495 = vunpack.c.l.b16 %v431
    %v496 = vunpack.c.l.b16 %v432
    %v497 = vunpack.c.l.b16 %v433
    %v498 = vunpack.c.l.b16 %v434
    %v499 = vunpack.c.l.b16 %v435
    %v500 = vunpack.c.l.b16 %v436
    %v501 = vunpack.c.l.b16 %v437
    %v502 = vunpack.c.l.b16 %v438
    %v503 = vunpack.c.l.b16 %v439
    %v504 = vunpack.c.l.b16 %v440
    %v505 = vunpack.c.l.b16 %v441
    %v506 = vunpack.c.l.b16 %v442
    %v507 = vunpack.c.l.b16 %v443
    %v508 = vunpack.c.l.b16 %v444
    %v509 = vunpack.c.l.b16 %v445
    %v510 = vunpack.c.l.b16 %v446
    %v511 = vunpack.c.l.b16 %v447
    %v512 = vunpack.c.l.b16 %v448
    %v513 = vunpack.c.l.b16 %v449
    %v514 = vunpack.c.l.b16 %v450
    %v515 = vunpack.c.l.b16 %v451
    %v516 = vpack.c.b16 %v485, %v484
    %v517 = vpack.c.b16 %v487, %v486
    %v518 = vpack.c.b16 %v489, %v488
    %v519 = vpack.c.b16 %v491, %v490
    %v520 = vpack.c.b16 %v493, %v492
    %v521 = vpack.c.b16 %v495, %v494
    %v522 = vpack.c.b16 %v497, %v496
    %v523 = vpack.c.b16 %v499, %v498
    %v524 = vpack.c.b16 %v501, %v500
    %v525 = vpack.c.b16 %v503, %v502
    %v526 = vpack.c.b16 %v505, %v504
    %v527 = vpack.c.b16 %v507, %v506
    %v528 = vpack.c.b16 %v509, %v508
    %v529 = vpack.c.b16 %v511, %v510
    %v530 = vpack.c.b16 %v513, %v512
    %v531 = vpack.c.b16 %v515, %v514
    %548 = vmatprep.subr.bf16.mxu0 0
    %549 = vmatpush1.bf16.msra.mxu0 %v516
    %550 = vmatprep.subr.bf16.mxu0 0
    %551 = vmatpush1.bf16.msra.mxu0 %v517
    %552 = vmatprep.subr.bf16.mxu0 0
    %553 = vmatpush1.bf16.msra.mxu0 %v518
    %554 = vmatprep.subr.bf16.mxu0 0
    %555 = vmatpush1.bf16.msra.mxu0 %v519
    %556 = vmatprep.subr.bf16.mxu0 0
    %557 = vmatpush1.bf16.msra.mxu0 %v520
    %558 = vmatprep.subr.bf16.mxu0 0
    %559 = vmatpush1.bf16.msra.mxu0 %v521
    %560 = vmatprep.subr.bf16.mxu0 0
    %561 = vmatpush1.bf16.msra.mxu0 %v522
    %562 = vmatprep.subr.bf16.mxu0 0
    %563 = vmatpush1.bf16.msra.mxu0 %v523
    %564 = vmatprep.subr.bf16.mxu0 0
    %565 = vmatpush1.bf16.msra.mxu0 %v524
    %566 = vmatprep.subr.bf16.mxu0 0
    %567 = vmatpush1.bf16.msra.mxu0 %v525
    %568 = vmatprep.subr.bf16.mxu0 0
    %569 = vmatpush1.bf16.msra.mxu0 %v526
    %570 = vmatprep.subr.bf16.mxu0 0
    %571 = vmatpush1.bf16.msra.mxu0 %v527
    %572 = vmatprep.subr.bf16.mxu0 0
    %573 = vmatpush1.bf16.msra.mxu0 %v528
    %574 = vmatprep.subr.bf16.mxu0 0
    %575 = vmatpush1.bf16.msra.mxu0 %v529
    %576 = vmatprep.subr.bf16.mxu0 0
    %577 = vmatpush1.bf16.msra.mxu0 %v530
    %578 = vmatprep.subr.bf16.mxu0 0
    %579 = vmatpush1.bf16.msra.mxu0 %v531
    %580 = vmatprep.mubr.bf16.mxu0 %v357
    %581 = vmatmul.mubr.bf16.gmra.mrb[0].mxu0 %v356
    %v582 = vpop.f32.mrb[0].mxu0
    %v583 = vadd.f32 0.0, %v582
    %v584 = vpop.f32.mrb[0].mxu0
    %v585 = vpop.f32.mrb[0].mxu0
    %v586 = vadd.f32 0.0, %v585
    %v587 = vpop.f32.mrb[0].mxu0
    %588 = vmatprep.mubr.bf16.mxu0 %v359
    %589 = vmatmul.mubr.bf16.gmra.mrb[0].mxu0 %v358
    %v590 = vpop.f32.mrb[0].mxu0
    %v591 = vadd.f32 0.0, %v590
    %v592 = vpop.f32.mrb[0].mxu0
    %v593 = vpop.f32.mrb[0].mxu0
    %v594 = vadd.f32 0.0, %v593
    %v595 = vpop.f32.mrb[0].mxu0
    %596 = vmatprep.mubr.bf16.mxu0 %v361
    %597 = vmatmul.mubr.bf16.gmra.mrb[0].mxu0 %v360
    %v598 = vpop.f32.mrb[0].mxu0
    %v599 = vadd.f32 0.0, %v598
    %v600 = vpop.f32.mrb[0].mxu0
    %v601 = vpop.f32.mrb[0].mxu0
    %v602 = vadd.f32 0.0, %v601
    %v603 = vpop.f32.mrb[0].mxu0
    %604 = vmatprep.mubr.bf16.mxu0 %v363
    %605 = vmatmul.mubr.bf16.gmra.mrb[0].mxu0 %v362
    %v606 = vpop.f32.mrb[0].mxu0
    %v607 = vadd.f32 0.0, %v606
    %v608 = vpop.f32.mrb[0].mxu0
    %v609 = vpop.f32.mrb[0].mxu0
    %v610 = vadd.f32 0.0, %v609
    %v611 = vpop.f32.mrb[0].mxu0
    %612 = vmatprep.mubr.bf16.mxu0 %v365
    %613 = vmatmul.mubr.bf16.gmra.mrb[0].mxu0 %v364
    %v614 = vpop.f32.mrb[0].mxu0
    %v615 = vadd.f32 0.0, %v614
    %v616 = vpop.f32.mrb[0].mxu0
    %v617 = vpop.f32.mrb[0].mxu0
    %v618 = vadd.f32 0.0, %v617
    %v619 = vpop.f32.mrb[0].mxu0
    %620 = vmatprep.mubr.bf16.mxu0 %v367
    %621 = vmatmul.mubr.bf16.gmra.mrb[0].mxu0 %v366
    %v622 = vpop.f32.mrb[0].mxu0
    %v623 = vadd.f32 0.0, %v622
    %v624 = vpop.f32.mrb[0].mxu0
    %v625 = vpop.f32.mrb[0].mxu0
    %v626 = vadd.f32 0.0, %v625
    %v627 = vpop.f32.mrb[0].mxu0
    %628 = vmatprep.mubr.bf16.mxu0 %v369
    %629 = vmatmul.mubr.bf16.gmra.mrb[0].mxu0 %v368
    %v630 = vpop.f32.mrb[0].mxu0
    %v631 = vadd.f32 0.0, %v630
    %v632 = vpop.f32.mrb[0].mxu0
    %v633 = vpop.f32.mrb[0].mxu0
    %v634 = vadd.f32 0.0, %v633
    %v635 = vpop.f32.mrb[0].mxu0
    %636 = vmatprep.mubr.bf16.mxu0 %v371
    %637 = vmatmul.mubr.bf16.gmra.mrb[0].mxu0 %v370
    %v638 = vpop.f32.mrb[0].mxu0
    %v639 = vadd.f32 0.0, %v638
    %v640 = vpop.f32.mrb[0].mxu0
    %v641 = vpop.f32.mrb[0].mxu0
    %v642 = vadd.f32 0.0, %v641
    %v643 = vpop.f32.mrb[0].mxu0
    %644 = vmatprep.mubr.bf16.mxu0 %v373
    %645 = vmatmul.mubr.bf16.gmra.mrb[0].mxu0 %v372
    %v646 = vpop.f32.mrb[0].mxu0
    %v647 = vadd.f32 0.0, %v646
    %v648 = vpop.f32.mrb[0].mxu0
    %v649 = vpop.f32.mrb[0].mxu0
    %v650 = vadd.f32 0.0, %v649
    %v651 = vpop.f32.mrb[0].mxu0
    %652 = vmatprep.mubr.bf16.mxu0 %v375
    %653 = vmatmul.mubr.bf16.gmra.mrb[0].mxu0 %v374
    %v654 = vpop.f32.mrb[0].mxu0
    %v655 = vadd.f32 0.0, %v654
    %v656 = vpop.f32.mrb[0].mxu0
    %v657 = vpop.f32.mrb[0].mxu0
    %v658 = vadd.f32 0.0, %v657
    %v659 = vpop.f32.mrb[0].mxu0
    %660 = vmatprep.mubr.bf16.mxu0 %v377
    %661 = vmatmul.mubr.bf16.gmra.mrb[0].mxu0 %v376
    %v662 = vpop.f32.mrb[0].mxu0
    %v663 = vadd.f32 0.0, %v662
    %v664 = vpop.f32.mrb[0].mxu0
    %v665 = vpop.f32.mrb[0].mxu0
    %v666 = vadd.f32 0.0, %v665
    %v667 = vpop.f32.mrb[0].mxu0
    %668 = vmatprep.mubr.bf16.mxu0 %v379
    %669 = vmatmul.mubr.bf16.gmra.mrb[0].mxu0 %v378
    %v670 = vpop.f32.mrb[0].mxu0
    %v671 = vadd.f32 0.0, %v670
    %v672 = vpop.f32.mrb[0].mxu0
    %v673 = vpop.f32.mrb[0].mxu0
    %v674 = vadd.f32 0.0, %v673
    %v675 = vpop.f32.mrb[0].mxu0
    %676 = vmatprep.mubr.bf16.mxu0 %v381
    %677 = vmatmul.mubr.bf16.gmra.mrb[0].mxu0 %v380
    %v678 = vpop.f32.mrb[0].mxu0
    %v679 = vadd.f32 0.0, %v678
    %v680 = vpop.f32.mrb[0].mxu0
    %v681 = vpop.f32.mrb[0].mxu0
    %v682 = vadd.f32 0.0, %v681
    %v683 = vpop.f32.mrb[0].mxu0
    %684 = vmatprep.mubr.bf16.mxu0 %v383
    %685 = vmatmul.mubr.bf16.gmra.mrb[0].mxu0 %v382
    %v686 = vpop.f32.mrb[0].mxu0
    %v687 = vadd.f32 0.0, %v686
    %v688 = vpop.f32.mrb[0].mxu0
    %v689 = vpop.f32.mrb[0].mxu0
    %v690 = vadd.f32 0.0, %v689
    %v691 = vpop.f32.mrb[0].mxu0
    %692 = vmatprep.mubr.bf16.mxu0 %v385
    %693 = vmatmul.mubr.bf16.gmra.mrb[0].mxu0 %v384
    %v694 = vpop.f32.mrb[0].mxu0
    %v695 = vadd.f32 0.0, %v694
    %v696 = vpop.f32.mrb[0].mxu0
    %v697 = vpop.f32.mrb[0].mxu0
    %v698 = vadd.f32 0.0, %v697
    %v699 = vpop.f32.mrb[0].mxu0
    %700 = vmatprep.mubr.bf16.mxu0 %v387
    %701 = vmatmul.mubr.bf16.gmra.mrb[0].mxu0 %v386
    %v702 = vpop.f32.mrb[0].mxu0
    %v703 = vadd.f32 0.0, %v702
    %v704 = vpop.f32.mrb[0].mxu0
    %v705 = vpop.f32.mrb[0].mxu0
    %v706 = vadd.f32 0.0, %v705
    %v707 = vpop.f32.mrb[0].mxu0
    %708 = vdwg.mxu0
    %v741 = vunpack.c.l.b16 %v388
    %v742 = vunpack.c.l.b16 %v389
    %v743 = vunpack.c.l.b16 %v390
    %v744 = vunpack.c.l.b16 %v391
    %v745 = vunpack.c.l.b16 %v392
    %v746 = vunpack.c.l.b16 %v393
    %v747 = vunpack.c.l.b16 %v394
    %v748 = vunpack.c.l.b16 %v395
    %v749 = vunpack.c.l.b16 %v396
    %v750 = vunpack.c.l.b16 %v397
    %v751 = vunpack.c.l.b16 %v398
    %v752 = vunpack.c.l.b16 %v399
    %v753 = vunpack.c.l.b16 %v400
    %v754 = vunpack.c.l.b16 %v401
    %v755 = vunpack.c.l.b16 %v402
    %v756 = vunpack.c.l.b16 %v403
    %v757 = vunpack.c.l.b16 %v404
    %v758 = vunpack.c.l.b16 %v405
    %v759 = vunpack.c.l.b16 %v406
    %v760 = vunpack.c.l.b16 %v407
    %v761 = vunpack.c.l.b16 %v408
    %v762 = vunpack.c.l.b16 %v409
    %v763 = vunpack.c.l.b16 %v410
    %v764 = vunpack.c.l.b16 %v411
    %v765 = vunpack.c.l.b16 %v412
    %v766 = vunpack.c.l.b16 %v413
    %v767 = vunpack.c.l.b16 %v414
    %v768 = vunpack.c.l.b16 %v415
    %v769 = vunpack.c.l.b16 %v416
    %v770 = vunpack.c.l.b16 %v417
    %v771 = vunpack.c.l.b16 %v418
    %v772 = vunpack.c.l.b16 %v419
    %v773 = vpack.c.b16 %v742, %v741
    %v774 = vpack.c.b16 %v744, %v743
    %v775 = vpack.c.b16 %v746, %v745
    %v776 = vpack.c.b16 %v748, %v747
    %v777 = vpack.c.b16 %v750, %v749
    %v778 = vpack.c.b16 %v752, %v751
    %v779 = vpack.c.b16 %v754, %v753
    %v780 = vpack.c.b16 %v756, %v755
    %v781 = vpack.c.b16 %v758, %v757
    %v782 = vpack.c.b16 %v760, %v759
    %v783 = vpack.c.b16 %v762, %v761
    %v784 = vpack.c.b16 %v764, %v763
    %v785 = vpack.c.b16 %v766, %v765
    %v786 = vpack.c.b16 %v768, %v767
    %v787 = vpack.c.b16 %v770, %v769
    %v788 = vpack.c.b16 %v772, %v771
    %805 = vmatprep.subr.bf16.mxu0 0
    %806 = vmatpush1.bf16.msra.mxu0 %v773
    %807 = vmatprep.subr.bf16.mxu0 0
    %808 = vmatpush1.bf16.msra.mxu0 %v774
    %809 = vmatprep.subr.bf16.mxu0 0
    %810 = vmatpush1.bf16.msra.mxu0 %v775
    %811 = vmatprep.subr.bf16.mxu0 0
    %812 = vmatpush1.bf16.msra.mxu0 %v776
    %813 = vmatprep.subr.bf16.mxu0 0
    %814 = vmatpush1.bf16.msra.mxu0 %v777
    %815 = vmatprep.subr.bf16.mxu0 0
    %816 = vmatpush1.bf16.msra.mxu0 %v778
    %817 = vmatprep.subr.bf16.mxu0 0
    %818 = vmatpush1.bf16.msra.mxu0 %v779
    %819 = vmatprep.subr.bf16.mxu0 0
    %820 = vmatpush1.bf16.msra.mxu0 %v780
    %821 = vmatprep.subr.bf16.mxu0 0
    %822 = vmatpush1.bf16.msra.mxu0 %v781
    %823 = vmatprep.subr.bf16.mxu0 0
    %824 = vmatpush1.bf16.msra.mxu0 %v782
    %825 = vmatprep.subr.bf16.mxu0 0
    %826 = vmatpush1.bf16.msra.mxu0 %v783
    %827 = vmatprep.subr.bf16.mxu0 0
    %828 = vmatpush1.bf16.msra.mxu0 %v784
    %829 = vmatprep.subr.bf16.mxu0 0
    %830 = vmatpush1.bf16.msra.mxu0 %v785
    %831 = vmatprep.subr.bf16.mxu0 0
    %832 = vmatpush1.bf16.msra.mxu0 %v786
    %833 = vmatprep.subr.bf16.mxu0 0
    %834 = vmatpush1.bf16.msra.mxu0 %v787
    %835 = vmatprep.subr.bf16.mxu0 0
    %836 = vmatpush1.bf16.msra.mxu0 %v788
    %837 = vmatprep.mubr.bf16.mxu0 %v357
    %838 = vmatmul.mubr.bf16.gmra.mrb[0].mxu0 %v356
    %v839 = vpop.f32.mrb[0].mxu0
    %v840 = vadd.f32 %v583, %v839
    %v841 = vpop.f32.mrb[0].mxu0
    %v842 = vpop.f32.mrb[0].mxu0
    %v843 = vadd.f32 %v586, %v842
    %v844 = vpop.f32.mrb[0].mxu0
    %845 = vmatprep.mubr.bf16.mxu0 %v359
    %846 = vmatmul.mubr.bf16.gmra.mrb[0].mxu0 %v358
    %v847 = vpop.f32.mrb[0].mxu0
    %v848 = vadd.f32 %v591, %v847
    %v849 = vpop.f32.mrb[0].mxu0
    %v850 = vpop.f32.mrb[0].mxu0
    %v851 = vadd.f32 %v594, %v850
    %v852 = vpop.f32.mrb[0].mxu0
    %853 = vmatprep.mubr.bf16.mxu0 %v361
    %854 = vmatmul.mubr.bf16.gmra.mrb[0].mxu0 %v360
    %v855 = vpop.f32.mrb[0].mxu0
    %v856 = vadd.f32 %v599, %v855
    %v857 = vpop.f32.mrb[0].mxu0
    %v858 = vpop.f32.mrb[0].mxu0
    %v859 = vadd.f32 %v602, %v858
    %v860 = vpop.f32.mrb[0].mxu0
    %861 = vmatprep.mubr.bf16.mxu0 %v363
    %862 = vmatmul.mubr.bf16.gmra.mrb[0].mxu0 %v362
    %v863 = vpop.f32.mrb[0].mxu0
    %v864 = vadd.f32 %v607, %v863
    %v865 = vpop.f32.mrb[0].mxu0
    %v866 = vpop.f32.mrb[0].mxu0
    %v867 = vadd.f32 %v610, %v866
    %v868 = vpop.f32.mrb[0].mxu0
    %869 = vmatprep.mubr.bf16.mxu0 %v365
    %870 = vmatmul.mubr.bf16.gmra.mrb[0].mxu0 %v364
    %v871 = vpop.f32.mrb[0].mxu0
    %v872 = vadd.f32 %v615, %v871
    %v873 = vpop.f32.mrb[0].mxu0
    %v874 = vpop.f32.mrb[0].mxu0
    %v875 = vadd.f32 %v618, %v874
    %v876 = vpop.f32.mrb[0].mxu0
    %877 = vmatprep.mubr.bf16.mxu0 %v367
    %878 = vmatmul.mubr.bf16.gmra.mrb[0].mxu0 %v366
    %v879 = vpop.f32.mrb[0].mxu0
    %v880 = vadd.f32 %v623, %v879
    %v881 = vpop.f32.mrb[0].mxu0
    %v882 = vpop.f32.mrb[0].mxu0
    %v883 = vadd.f32 %v626, %v882
    %v884 = vpop.f32.mrb[0].mxu0
    %885 = vmatprep.mubr.bf16.mxu0 %v369
    %886 = vmatmul.mubr.bf16.gmra.mrb[0].mxu0 %v368
    %v887 = vpop.f32.mrb[0].mxu0
    %v888 = vadd.f32 %v631, %v887
    %v889 = vpop.f32.mrb[0].mxu0
    %v890 = vpop.f32.mrb[0].mxu0
    %v891 = vadd.f32 %v634, %v890
    %v892 = vpop.f32.mrb[0].mxu0
    %893 = vmatprep.mubr.bf16.mxu0 %v371
    %894 = vmatmul.mubr.bf16.gmra.mrb[0].mxu0 %v370
    %v895 = vpop.f32.mrb[0].mxu0
    %v896 = vadd.f32 %v639, %v895
    %v897 = vpop.f32.mrb[0].mxu0
    %v898 = vpop.f32.mrb[0].mxu0
    %v899 = vadd.f32 %v642, %v898
    %v900 = vpop.f32.mrb[0].mxu0
    %901 = vmatprep.mubr.bf16.mxu0 %v373
    %902 = vmatmul.mubr.bf16.gmra.mrb[0].mxu0 %v372
    %v903 = vpop.f32.mrb[0].mxu0
    %v904 = vadd.f32 %v647, %v903
    %v905 = vpop.f32.mrb[0].mxu0
    %v906 = vpop.f32.mrb[0].mxu0
    %v907 = vadd.f32 %v650, %v906
    %v908 = vpop.f32.mrb[0].mxu0
    %909 = vmatprep.mubr.bf16.mxu0 %v375
    %910 = vmatmul.mubr.bf16.gmra.mrb[0].mxu0 %v374
    %v911 = vpop.f32.mrb[0].mxu0
    %v912 = vadd.f32 %v655, %v911
    %v913 = vpop.f32.mrb[0].mxu0
    %v914 = vpop.f32.mrb[0].mxu0
    %v915 = vadd.f32 %v658, %v914
    %v916 = vpop.f32.mrb[0].mxu0
    %917 = vmatprep.mubr.bf16.mxu0 %v377
    %918 = vmatmul.mubr.bf16.gmra.mrb[0].mxu0 %v376
    %v919 = vpop.f32.mrb[0].mxu0
    %v920 = vadd.f32 %v663, %v919
    %v921 = vpop.f32.mrb[0].mxu0
    %v922 = vpop.f32.mrb[0].mxu0
    %v923 = vadd.f32 %v666, %v922
    %v924 = vpop.f32.mrb[0].mxu0
    %925 = vmatprep.mubr.bf16.mxu0 %v379
    %926 = vmatmul.mubr.bf16.gmra.mrb[0].mxu0 %v378
    %v927 = vpop.f32.mrb[0].mxu0
    %v928 = vadd.f32 %v671, %v927
    %v929 = vpop.f32.mrb[0].mxu0
    %v930 = vpop.f32.mrb[0].mxu0
    %v931 = vadd.f32 %v674, %v930
    %v932 = vpop.f32.mrb[0].mxu0
    %933 = vmatprep.mubr.bf16.mxu0 %v381
    %934 = vmatmul.mubr.bf16.gmra.mrb[0].mxu0 %v380
    %v935 = vpop.f32.mrb[0].mxu0
    %v936 = vadd.f32 %v679, %v935
    %v937 = vpop.f32.mrb[0].mxu0
    %v938 = vpop.f32.mrb[0].mxu0
    %v939 = vadd.f32 %v682, %v938
    %v940 = vpop.f32.mrb[0].mxu0
    %941 = vmatprep.mubr.bf16.mxu0 %v383
    %942 = vmatmul.mubr.bf16.gmra.mrb[0].mxu0 %v382
    %v943 = vpop.f32.mrb[0].mxu0
    %v944 = vadd.f32 %v687, %v943
    %v945 = vpop.f32.mrb[0].mxu0
    %v946 = vpop.f32.mrb[0].mxu0
    %v947 = vadd.f32 %v690, %v946
    %v948 = vpop.f32.mrb[0].mxu0
    %949 = vmatprep.mubr.bf16.mxu0 %v385
    %950 = vmatmul.mubr.bf16.gmra.mrb[0].mxu0 %v384
    %v951 = vpop.f32.mrb[0].mxu0
    %v952 = vadd.f32 %v695, %v951
    %v953 = vpop.f32.mrb[0].mxu0
    %v954 = vpop.f32.mrb[0].mxu0
    %v955 = vadd.f32 %v698, %v954
    %v956 = vpop.f32.mrb[0].mxu0
    %957 = vmatprep.mubr.bf16.mxu0 %v387
    %958 = vmatmul.mubr.bf16.gmra.mrb[0].mxu0 %v386
    %v959 = vpop.f32.mrb[0].mxu0
    %v960 = vadd.f32 %v703, %v959
    %v961 = vpop.f32.mrb[0].mxu0
    %v962 = vpop.f32.mrb[0].mxu0
    %v963 = vadd.f32 %v706, %v962
    %v964 = vpop.f32.mrb[0].mxu0
    %965 = vdwg.mxu0
    %v966 = vld [vmem:[#allocation2] sm:$0xf]
    %v967 = vld [vmem:[#allocation2 + $0x4] sm:$0xf]
    %v968 = vld [vmem:[#allocation2 + $0x8] sm:$0xf]
    %v969 = vld [vmem:[#allocation2 + $0xc] sm:$0xf]
    %v970 = vld [vmem:[#allocation2 + $0x10] sm:$0xf]
    %v971 = vld [vmem:[#allocation2 + $0x14] sm:$0xf]
    %v972 = vld [vmem:[#allocation2 + $0x18] sm:$0xf]
    %v973 = vld [vmem:[#allocation2 + $0x1c] sm:$0xf]
    %v974 = vld [vmem:[#allocation2 + $0x20] sm:$0xf]
    %v975 = vld [vmem:[#allocation2 + $0x24] sm:$0xf]
    %v976 = vld [vmem:[#allocation2 + $0x28] sm:$0xf]
    %v977 = vld [vmem:[#allocation2 + $0x2c] sm:$0xf]
    %v978 = vld [vmem:[#allocation2 + $0x30] sm:$0xf]
    %v979 = vld [vmem:[#allocation2 + $0x34] sm:$0xf]
    %v980 = vld [vmem:[#allocation2 + $0x38] sm:$0xf]
    %v981 = vld [vmem:[#allocation2 + $0x3c] sm:$0xf]
    %v982 = vld [vmem:[#allocation2 + $0x40] sm:$0xf]
    %v983 = vld [vmem:[#allocation2 + $0x44] sm:$0xf]
    %v984 = vld [vmem:[#allocation2 + $0x48] sm:$0xf]
    %v985 = vld [vmem:[#allocation2 + $0x4c] sm:$0xf]
    %v986 = vld [vmem:[#allocation2 + $0x50] sm:$0xf]
    %v987 = vld [vmem:[#allocation2 + $0x54] sm:$0xf]
    %v988 = vld [vmem:[#allocation2 + $0x58] sm:$0xf]
    %v989 = vld [vmem:[#allocation2 + $0x5c] sm:$0xf]
    %v990 = vld [vmem:[#allocation2 + $0x60] sm:$0xf]
    %v991 = vld [vmem:[#allocation2 + $0x64] sm:$0xf]
    %v992 = vld [vmem:[#allocation2 + $0x68] sm:$0xf]
    %v993 = vld [vmem:[#allocation2 + $0x6c] sm:$0xf]
    %v994 = vld [vmem:[#allocation2 + $0x70] sm:$0xf]
    %v995 = vld [vmem:[#allocation2 + $0x74] sm:$0xf]
    %v996 = vld [vmem:[#allocation2 + $0x78] sm:$0xf]
    %v997 = vld [vmem:[#allocation2 + $0x7c] sm:$0xf]
    %v1030 = vunpack.c.l.b16 %v966
    %v1031 = vunpack.c.l.b16 %v967
    %v1032 = vunpack.c.l.b16 %v968
    %v1033 = vunpack.c.l.b16 %v969
    %v1034 = vunpack.c.l.b16 %v970
    %v1035 = vunpack.c.l.b16 %v971
    %v1036 = vunpack.c.l.b16 %v972
    %v1037 = vunpack.c.l.b16 %v973
    %v1038 = vunpack.c.l.b16 %v974
    %v1039 = vunpack.c.l.b16 %v975
    %v1040 = vunpack.c.l.b16 %v976
    %v1041 = vunpack.c.l.b16 %v977
    %v1042 = vunpack.c.l.b16 %v978
    %v1043 = vunpack.c.l.b16 %v979
    %v1044 = vunpack.c.l.b16 %v980
    %v1045 = vunpack.c.l.b16 %v981
    %v1046 = vunpack.c.l.b16 %v982
    %v1047 = vunpack.c.l.b16 %v983
    %v1048 = vunpack.c.l.b16 %v984
    %v1049 = vunpack.c.l.b16 %v985
    %v1050 = vunpack.c.l.b16 %v986
    %v1051 = vunpack.c.l.b16 %v987
    %v1052 = vunpack.c.l.b16 %v988
    %v1053 = vunpack.c.l.b16 %v989
    %v1054 = vunpack.c.l.b16 %v990
    %v1055 = vunpack.c.l.b16 %v991
    %v1056 = vunpack.c.l.b16 %v992
    %v1057 = vunpack.c.l.b16 %v993
    %v1058 = vunpack.c.l.b16 %v994
    %v1059 = vunpack.c.l.b16 %v995
    %v1060 = vunpack.c.l.b16 %v996
    %v1061 = vunpack.c.l.b16 %v997
    %v1062 = vpack.c.b16 %v1031, %v1030
    %v1063 = vpack.c.b16 %v1033, %v1032
    %v1064 = vpack.c.b16 %v1035, %v1034
    %v1065 = vpack.c.b16 %v1037, %v1036
    %v1066 = vpack.c.b16 %v1039, %v1038
    %v1067 = vpack.c.b16 %v1041, %v1040
    %v1068 = vpack.c.b16 %v1043, %v1042
    %v1069 = vpack.c.b16 %v1045, %v1044
    %v1070 = vpack.c.b16 %v1047, %v1046
    %v1071 = vpack.c.b16 %v1049, %v1048
    %v1072 = vpack.c.b16 %v1051, %v1050
    %v1073 = vpack.c.b16 %v1053, %v1052
    %v1074 = vpack.c.b16 %v1055, %v1054
    %v1075 = vpack.c.b16 %v1057, %v1056
    %v1076 = vpack.c.b16 %v1059, %v1058
    %v1077 = vpack.c.b16 %v1061, %v1060
    %1094 = vmatprep.subr.bf16.mxu0 0
    %1095 = vmatpush1.bf16.msra.mxu0 %v1062
    %1096 = vmatprep.subr.bf16.mxu0 0
    %1097 = vmatpush1.bf16.msra.mxu0 %v1063
    %1098 = vmatprep.subr.bf16.mxu0 0
    %1099 = vmatpush1.bf16.msra.mxu0 %v1064
    %1100 = vmatprep.subr.bf16.mxu0 0
    %1101 = vmatpush1.bf16.msra.mxu0 %v1065
    %1102 = vmatprep.subr.bf16.mxu0 0
    %1103 = vmatpush1.bf16.msra.mxu0 %v1066
    %1104 = vmatprep.subr.bf16.mxu0 0
    %1105 = vmatpush1.bf16.msra.mxu0 %v1067
    %1106 = vmatprep.subr.bf16.mxu0 0
    %1107 = vmatpush1.bf16.msra.mxu0 %v1068
    %1108 = vmatprep.subr.bf16.mxu0 0
    %1109 = vmatpush1.bf16.msra.mxu0 %v1069
    %1110 = vmatprep.subr.bf16.mxu0 0
    %1111 = vmatpush1.bf16.msra.mxu0 %v1070
    %1112 = vmatprep.subr.bf16.mxu0 0
    %1113 = vmatpush1.bf16.msra.mxu0 %v1071
    %1114 = vmatprep.subr.bf16.mxu0 0
    %1115 = vmatpush1.bf16.msra.mxu0 %v1072
    %1116 = vmatprep.subr.bf16.mxu0 0
    %1117 = vmatpush1.bf16.msra.mxu0 %v1073
    %1118 = vmatprep.subr.bf16.mxu0 0
    %1119 = vmatpush1.bf16.msra.mxu0 %v1074
    %1120 = vmatprep.subr.bf16.mxu0 0
    %1121 = vmatpush1.bf16.msra.mxu0 %v1075
    %1122 = vmatprep.subr.bf16.mxu0 0
    %1123 = vmatpush1.bf16.msra.mxu0 %v1076
    %1124 = vmatprep.subr.bf16.mxu0 0
    %1125 = vmatpush1.bf16.msra.mxu0 %v1077
    %1126 = vmatprep.mubr.bf16.mxu0 %v357
    %1127 = vmatmul.mubr.bf16.gmra.mrb[0].mxu0 %v356
    %v1128 = vpop.f32.mrb[0].mxu0
    %v1129 = vadd.f32 0.0, %v1128
    %v1130 = vpop.f32.mrb[0].mxu0
    %v1131 = vpop.f32.mrb[0].mxu0
    %v1132 = vadd.f32 0.0, %v1131
    %v1133 = vpop.f32.mrb[0].mxu0
    %1134 = vmatprep.mubr.bf16.mxu0 %v359
    %1135 = vmatmul.mubr.bf16.gmra.mrb[0].mxu0 %v358
    %v1136 = vpop.f32.mrb[0].mxu0
    %v1137 = vadd.f32 0.0, %v1136
    %v1138 = vpop.f32.mrb[0].mxu0
    %v1139 = vpop.f32.mrb[0].mxu0
    %v1140 = vadd.f32 0.0, %v1139
    %v1141 = vpop.f32.mrb[0].mxu0
    %1142 = vmatprep.mubr.bf16.mxu0 %v361
    %1143 = vmatmul.mubr.bf16.gmra.mrb[0].mxu0 %v360
    %v1144 = vpop.f32.mrb[0].mxu0
    %v1145 = vadd.f32 0.0, %v1144
    %v1146 = vpop.f32.mrb[0].mxu0
    %v1147 = vpop.f32.mrb[0].mxu0
    %v1148 = vadd.f32 0.0, %v1147
    %v1149 = vpop.f32.mrb[0].mxu0
    %1150 = vmatprep.mubr.bf16.mxu0 %v363
    %1151 = vmatmul.mubr.bf16.gmra.mrb[0].mxu0 %v362
    %v1152 = vpop.f32.mrb[0].mxu0
    %v1153 = vadd.f32 0.0, %v1152
    %v1154 = vpop.f32.mrb[0].mxu0
    %v1155 = vpop.f32.mrb[0].mxu0
    %v1156 = vadd.f32 0.0, %v1155
    %v1157 = vpop.f32.mrb[0].mxu0
    %1158 = vmatprep.mubr.bf16.mxu0 %v365
    %1159 = vmatmul.mubr.bf16.gmra.mrb[0].mxu0 %v364
    %v1160 = vpop.f32.mrb[0].mxu0
    %v1161 = vadd.f32 0.0, %v1160
    %v1162 = vpop.f32.mrb[0].mxu0
    %v1163 = vpop.f32.mrb[0].mxu0
    %v1164 = vadd.f32 0.0, %v1163
    %v1165 = vpop.f32.mrb[0].mxu0
    %1166 = vmatprep.mubr.bf16.mxu0 %v367
    %1167 = vmatmul.mubr.bf16.gmra.mrb[0].mxu0 %v366
    %v1168 = vpop.f32.mrb[0].mxu0
    %v1169 = vadd.f32 0.0, %v1168
    %v1170 = vpop.f32.mrb[0].mxu0
    %v1171 = vpop.f32.mrb[0].mxu0
    %v1172 = vadd.f32 0.0, %v1171
    %v1173 = vpop.f32.mrb[0].mxu0
    %1174 = vmatprep.mubr.bf16.mxu0 %v369
    %1175 = vmatmul.mubr.bf16.gmra.mrb[0].mxu0 %v368
    %v1176 = vpop.f32.mrb[0].mxu0
    %v1177 = vadd.f32 0.0, %v1176
    %v1178 = vpop.f32.mrb[0].mxu0
    %v1179 = vpop.f32.mrb[0].mxu0
    %v1180 = vadd.f32 0.0, %v1179
    %v1181 = vpop.f32.mrb[0].mxu0
    %1182 = vmatprep.mubr.bf16.mxu0 %v371
    %1183 = vmatmul.mubr.bf16.gmra.mrb[0].mxu0 %v370
    %v1184 = vpop.f32.mrb[0].mxu0
    %v1185 = vadd.f32 0.0, %v1184
    %v1186 = vpop.f32.mrb[0].mxu0
    %v1187 = vpop.f32.mrb[0].mxu0
    %v1188 = vadd.f32 0.0, %v1187
    %v1189 = vpop.f32.mrb[0].mxu0
    %1190 = vmatprep.mubr.bf16.mxu0 %v373
    %1191 = vmatmul.mubr.bf16.gmra.mrb[0].mxu0 %v372
    %v1192 = vpop.f32.mrb[0].mxu0
    %v1193 = vadd.f32 0.0, %v1192
    %v1194 = vpop.f32.mrb[0].mxu0
    %v1195 = vpop.f32.mrb[0].mxu0
    %v1196 = vadd.f32 0.0, %v1195
    %v1197 = vpop.f32.mrb[0].mxu0
    %1198 = vmatprep.mubr.bf16.mxu0 %v375
    %1199 = vmatmul.mubr.bf16.gmra.mrb[0].mxu0 %v374
    %v1200 = vpop.f32.mrb[0].mxu0
    %v1201 = vadd.f32 0.0, %v1200
    %v1202 = vpop.f32.mrb[0].mxu0
    %v1203 = vpop.f32.mrb[0].mxu0
    %v1204 = vadd.f32 0.0, %v1203
    %v1205 = vpop.f32.mrb[0].mxu0
    %1206 = vmatprep.mubr.bf16.mxu0 %v377
    %1207 = vmatmul.mubr.bf16.gmra.mrb[0].mxu0 %v376
    %v1208 = vpop.f32.mrb[0].mxu0
    %v1209 = vadd.f32 0.0, %v1208
    %v1210 = vpop.f32.mrb[0].mxu0
    %v1211 = vpop.f32.mrb[0].mxu0
    %v1212 = vadd.f32 0.0, %v1211
    %v1213 = vpop.f32.mrb[0].mxu0
    %1214 = vmatprep.mubr.bf16.mxu0 %v379
    %1215 = vmatmul.mubr.bf16.gmra.mrb[0].mxu0 %v378
    %v1216 = vpop.f32.mrb[0].mxu0
    %v1217 = vadd.f32 0.0, %v1216
    %v1218 = vpop.f32.mrb[0].mxu0
    %v1219 = vpop.f32.mrb[0].mxu0
    %v1220 = vadd.f32 0.0, %v1219
    %v1221 = vpop.f32.mrb[0].mxu0
    %1222 = vmatprep.mubr.bf16.mxu0 %v381
    %1223 = vmatmul.mubr.bf16.gmra.mrb[0].mxu0 %v380
    %v1224 = vpop.f32.mrb[0].mxu0
    %v1225 = vadd.f32 0.0, %v1224
    %v1226 = vpop.f32.mrb[0].mxu0
    %v1227 = vpop.f32.mrb[0].mxu0
    %v1228 = vadd.f32 0.0, %v1227
    %v1229 = vpop.f32.mrb[0].mxu0
    %1230 = vmatprep.mubr.bf16.mxu0 %v383
    %1231 = vmatmul.mubr.bf16.gmra.mrb[0].mxu0 %v382
    %v1232 = vpop.f32.mrb[0].mxu0
    %v1233 = vadd.f32 0.0, %v1232
    %v1234 = vpop.f32.mrb[0].mxu0
    %v1235 = vpop.f32.mrb[0].mxu0
    %v1236 = vadd.f32 0.0, %v1235
    %v1237 = vpop.f32.mrb[0].mxu0
    %1238 = vmatprep.mubr.bf16.mxu0 %v385
    %1239 = vmatmul.mubr.bf16.gmra.mrb[0].mxu0 %v384
    %v1240 = vpop.f32.mrb[0].mxu0
    %v1241 = vadd.f32 0.0, %v1240
    %v1242 = vpop.f32.mrb[0].mxu0
    %v1243 = vpop.f32.mrb[0].mxu0
    %v1244 = vadd.f32 0.0, %v1243
    %v1245 = vpop.f32.mrb[0].mxu0
    %1246 = vmatprep.mubr.bf16.mxu0 %v387
    %1247 = vmatmul.mubr.bf16.gmra.mrb[0].mxu0 %v386
    %v1248 = vpop.f32.mrb[0].mxu0
    %v1249 = vadd.f32 0.0, %v1248
    %v1250 = vpop.f32.mrb[0].mxu0
    %v1251 = vpop.f32.mrb[0].mxu0
    %v1252 = vadd.f32 0.0, %v1251
    %v1253 = vpop.f32.mrb[0].mxu0
    %1254 = vdwg.mxu0
    %v1255 = vadd.f32 %v840, %v1129
    %v1256 = vadd.f32 %v843, %v1132
    %v1257 = vadd.f32 %v848, %v1137
    %v1258 = vadd.f32 %v851, %v1140
    %v1259 = vadd.f32 %v856, %v1145
    %v1260 = vadd.f32 %v859, %v1148
    %v1261 = vadd.f32 %v864, %v1153
    %v1262 = vadd.f32 %v867, %v1156
    %v1263 = vadd.f32 %v872, %v1161
    %v1264 = vadd.f32 %v875, %v1164
    %v1265 = vadd.f32 %v880, %v1169
    %v1266 = vadd.f32 %v883, %v1172
    %v1267 = vadd.f32 %v888, %v1177
    %v1268 = vadd.f32 %v891, %v1180
    %v1269 = vadd.f32 %v896, %v1185
    %v1270 = vadd.f32 %v899, %v1188
    %v1271 = vadd.f32 %v904, %v1193
    %v1272 = vadd.f32 %v907, %v1196
    %v1273 = vadd.f32 %v912, %v1201
    %v1274 = vadd.f32 %v915, %v1204
    %v1275 = vadd.f32 %v920, %v1209
    %v1276 = vadd.f32 %v923, %v1212
    %v1277 = vadd.f32 %v928, %v1217
    %v1278 = vadd.f32 %v931, %v1220
    %v1279 = vadd.f32 %v936, %v1225
    %v1280 = vadd.f32 %v939, %v1228
    %v1281 = vadd.f32 %v944, %v1233
    %v1282 = vadd.f32 %v947, %v1236
    %v1283 = vadd.f32 %v952, %v1241
    %v1284 = vadd.f32 %v955, %v1244
    %v1285 = vadd.f32 %v960, %v1249
    %v1286 = vadd.f32 %v963, %v1252
    %1287 = vst [vmem:[#allocation5] sm:$0xff] %v1255
    %1288 = vst [vmem:[#allocation5 + $0x8] sm:$0xff] %v1256
    %1289 = vst [vmem:[#allocation5 + $0x10] sm:$0xff] %v1257
    %1290 = vst [vmem:[#allocation5 + $0x18] sm:$0xff] %v1258
    %1291 = vst [vmem:[#allocation5 + $0x20] sm:$0xff] %v1259
    %1292 = vst [vmem:[#allocation5 + $0x28] sm:$0xff] %v1260
    %1293 = vst [vmem:[#allocation5 + $0x30] sm:$0xff] %v1261
    %1294 = vst [vmem:[#allocation5 + $0x38] sm:$0xff] %v1262
    %1295 = vst [vmem:[#allocation5 + $0x40] sm:$0xff] %v1263
    %1296 = vst [vmem:[#allocation5 + $0x48] sm:$0xff] %v1264
    %1297 = vst [vmem:[#allocation5 + $0x50] sm:$0xff] %v1265
    %1298 = vst [vmem:[#allocation5 + $0x58] sm:$0xff] %v1266
    %1299 = vst [vmem:[#allocation5 + $0x60] sm:$0xff] %v1267
    %1300 = vst [vmem:[#allocation5 + $0x68] sm:$0xff] %v1268
    %1301 = vst [vmem:[#allocation5 + $0x70] sm:$0xff] %v1269
    %1302 = vst [vmem:[#allocation5 + $0x78] sm:$0xff] %v1270
    %1303 = vst [vmem:[#allocation5 + $0x80] sm:$0xff] %v1271
    %1304 = vst [vmem:[#allocation5 + $0x88] sm:$0xff] %v1272
    %1305 = vst [vmem:[#allocation5 + $0x90] sm:$0xff] %v1273
    %1306 = vst [vmem:[#allocation5 + $0x98] sm:$0xff] %v1274
    %1307 = vst [vmem:[#allocation5 + $0xa0] sm:$0xff] %v1275
    %1308 = vst [vmem:[#allocation5 + $0xa8] sm:$0xff] %v1276
    %1309 = vst [vmem:[#allocation5 + $0xb0] sm:$0xff] %v1277
    %1310 = vst [vmem:[#allocation5 + $0xb8] sm:$0xff] %v1278
    %1311 = vst [vmem:[#allocation5 + $0xc0] sm:$0xff] %v1279
    %1312 = vst [vmem:[#allocation5 + $0xc8] sm:$0xff] %v1280
    %1313 = vst [vmem:[#allocation5 + $0xd0] sm:$0xff] %v1281
    %1314 = vst [vmem:[#allocation5 + $0xd8] sm:$0xff] %v1282
    %1315 = vst [vmem:[#allocation5 + $0xe0] sm:$0xff] %v1283
    %1316 = vst [vmem:[#allocation5 + $0xe8] sm:$0xff] %v1284
    %1317 = vst [vmem:[#allocation5 + $0xf0] sm:$0xff] %v1285
    %1318 = vst [vmem:[#allocation5 + $0xf8] sm:$0xff] %v1286
    // Predicated region
    $region22: #{tpu_custom_call.1} parent=1 // pred_check
      _
    $region23: #{tpu_custom_call.1} parent=1 // pred_check_branch
      %1320 = sbr.rel (0) target = $region25
    $region24: #{tpu_custom_call.1} parent=1 // pred_region
      %s1322 = ssub.s32 4096, 4096
      %1323 = vsyncadd [#allocation4], %s1322
      %s1324 = sshll.u32 [#allocation5], 4
      %s1325 = int_to_ptr.vmem [resolvable:$true] %s1324
      %1330 = dma.vmem_to_hbm [thread:$0]  %s1325, 4096, %s4, [#allocation4], 128, 128, 8
    $region25: #{tpu_custom_call.1} parent=1 // pred_fallthru
      _
    // Predicated region
    $region26: #{tpu_custom_call.1} parent=1 // pred_check
      _
    $region27: #{tpu_custom_call.1} parent=1 // pred_check_branch
      %1332 = sbr.rel (0) target = $region29
    $region28: #{tpu_custom_call.1} parent=1 // pred_region
      %1333 = dma.done [#allocation4], 4096
    $region29: #{tpu_custom_call.1} parent=1 // pred_fallthru
      _
    %1334 = vsyncpa [#allocation3], 1
    %1335 = vsyncpa [#allocation4], 1

// kernel: tpu_custom_call.1
$region0: #{tpu_custom_call.1}
  #allocation0 [shape = 'u32[]', space=smem, size = 0x4, offset = 0x4, fixed_abs, tag = 'smem constant byte address 0x4 - core index']
  #allocation1 [shape = 'u32[144,128]{1,0:T(1,128)}', space=vmem, size = 0x12000, scoped, tag = 'internal scratch']
  %s0 = inlined_call_operand.vmem [shape: s32[256,1], index: 0, kind: input, shape index: {}]
  %s1 = inlined_call_operand.vmem [shape: bf16[256,128], index: 1, kind: input, shape index: {}]
  %s2 = inlined_call_operand.vmem [shape: bf16[256,128], index: 2, kind: input, shape index: {}]
  %s3 = inlined_call_operand.hbm [shape: bf16[256,128], index: 3, kind: input, shape index: {}]
  %s4 = inlined_call_operand.hbm [shape: f32[256,128], index: 4, kind: output, shape index: {}]
  %s5 = sld [smem:[#allocation0]]
  $region30: #{tpu_custom_call.1} parent=0
    _
  %s7 = ssub.s32 1, %s5
  %s8 = scalar_select 0, %s7, %s5
  $region1: #{tpu_custom_call.1} parent=0
    #allocation2 [shape = 'u8[65536]{0}', space=vmem, size = 0x10000, scoped, tag = 'input window, operand 3, single buffered']
    #allocation3 [shape = 's32[1]{0}', space=sflag, size = 0x4, scoped, tag = 'scoped memory for tpu_custom_call.1']
    #allocation4 [shape = 's32[1]{0}', space=sflag, size = 0x4, scoped, tag = 'scoped memory for tpu_custom_call.1']
    #allocation5 [shape = 'u8[131072]{0}', space=vmem, size = 0x20000, scoped, tag = 'output window, operand 0, single buffered']
    %9 = vsyncpa [#allocation3], 0
    %10 = vsyncpa [#allocation4], 0
    // Predicated region
    $region2: #{tpu_custom_call.1} parent=1 // pred_check
      _
    $region3: #{tpu_custom_call.1} parent=1 // pred_check_branch
      %12 = sbr.rel (0) target = $region5
    $region4: #{tpu_custom_call.1} parent=1 // pred_region
      _
    $region5: #{tpu_custom_call.1} parent=1 // pred_fallthru
      _
    // Predicated region
    $region6: #{tpu_custom_call.1} parent=1 // pred_check
      _
    $region7: #{tpu_custom_call.1} parent=1 // pred_check_branch
      %14 = sbr.rel (0) target = $region9
    $region8: #{tpu_custom_call.1} parent=1 // pred_region
      _
    $region9: #{tpu_custom_call.1} parent=1 // pred_fallthru
      _
    // Predicated region
    $region10: #{tpu_custom_call.1} parent=1 // pred_check
      _
    $region11: #{tpu_custom_call.1} parent=1 // pred_check_branch
      %16 = sbr.rel (0) target = $region13
    $region12: #{tpu_custom_call.1} parent=1 // pred_region
      _
    $region13: #{tpu_custom_call.1} parent=1 // pred_fallthru
      _
    // Predicated region
    $region14: #{tpu_custom_call.1} parent=1 // pred_check
      _
    $region15: #{tpu_custom_call.1} parent=1 // pred_check_branch
      %18 = sbr.rel (0) target = $region17
    $region16: #{tpu_custom_call.1} parent=1 // pred_region
      %s20 = ssub.s32 2048, 2048
      %21 = vsyncadd [#allocation3], %s20
      %s22 = sshll.u32 [#allocation2], 4
      %s23 = int_to_ptr.vmem [resolvable:$true] %s22
      %28 = dma.hbm_to_vmem [thread:$0]  %s3, 2048, %s23, [#allocation3], 64, 64, 4
    $region17: #{tpu_custom_call.1} parent=1 // pred_fallthru
      _
    // Predicated region
    $region18: #{tpu_custom_call.1} parent=1 // pred_check
      _
    $region19: #{tpu_custom_call.1} parent=1 // pred_check_branch
      %30 = sbr.rel (0) target = $region21
    $region20: #{tpu_custom_call.1} parent=1 // pred_region
      %31 = dma.done [#allocation3], 2048
    $region21: #{tpu_custom_call.1} parent=1 // pred_fallthru
      _
    %v33 = vld [vmem:[%s0] sm:$0xff]
    %v34 = vld [vmem:[%s0 + $0x8] sm:$0xff]
    %v35 = vld [vmem:[%s0 + $0x10] sm:$0xff]
    %v36 = vld [vmem:[%s0 + $0x18] sm:$0xff]
    %v37 = vld [vmem:[%s0 + $0x20] sm:$0xff]
    %v38 = vld [vmem:[%s0 + $0x28] sm:$0xff]
    %v39 = vld [vmem:[%s0 + $0x30] sm:$0xff]
    %v40 = vld [vmem:[%s0 + $0x38] sm:$0xff]
    %v41 = vld [vmem:[%s0 + $0x40] sm:$0xff]
    %v42 = vld [vmem:[%s0 + $0x48] sm:$0xff]
    %v43 = vld [vmem:[%s0 + $0x50] sm:$0xff]
    %v44 = vld [vmem:[%s0 + $0x58] sm:$0xff]
    %v45 = vld [vmem:[%s0 + $0x60] sm:$0xff]
    %v46 = vld [vmem:[%s0 + $0x68] sm:$0xff]
    %v47 = vld [vmem:[%s0 + $0x70] sm:$0xff]
    %v48 = vld [vmem:[%s0 + $0x78] sm:$0xff]
    %v49 = vld [vmem:[%s0 + $0x80] sm:$0xff]
    %v50 = vld [vmem:[%s0 + $0x88] sm:$0xff]
    %v51 = vld [vmem:[%s0 + $0x90] sm:$0xff]
    %v52 = vld [vmem:[%s0 + $0x98] sm:$0xff]
    %v53 = vld [vmem:[%s0 + $0xa0] sm:$0xff]
    %v54 = vld [vmem:[%s0 + $0xa8] sm:$0xff]
    %v55 = vld [vmem:[%s0 + $0xb0] sm:$0xff]
    %v56 = vld [vmem:[%s0 + $0xb8] sm:$0xff]
    %v57 = vld [vmem:[%s0 + $0xc0] sm:$0xff]
    %v58 = vld [vmem:[%s0 + $0xc8] sm:$0xff]
    %v59 = vld [vmem:[%s0 + $0xd0] sm:$0xff]
    %v60 = vld [vmem:[%s0 + $0xd8] sm:$0xff]
    %v61 = vld [vmem:[%s0 + $0xe0] sm:$0xff]
    %v62 = vld [vmem:[%s0 + $0xe8] sm:$0xff]
    %v63 = vld [vmem:[%s0 + $0xf0] sm:$0xff]
    %v64 = vld [vmem:[%s0 + $0xf8] sm:$0xff]
    %v65 = vlaneseq
    %v66 = vand.u32 %v65, 127
    %v67 = vadd.s32 %v66, 128
    %68 = vset.pattern.permute.xlu0 0
    %69 = vperm.xlu0 %68, %v33
    %v70 = vpop.permute.xlu0 %69
    %71 = vset.pattern.permute.xlu0 0
    %72 = vperm.xlu0 %71, %v34
    %v73 = vpop.permute.xlu0 %72
    %74 = vset.pattern.permute.xlu0 0
    %75 = vperm.xlu0 %74, %v35
    %v76 = vpop.permute.xlu0 %75
    %77 = vset.pattern.permute.xlu0 0
    %78 = vperm.xlu0 %77, %v36
    %v79 = vpop.permute.xlu0 %78
    %80 = vset.pattern.permute.xlu0 0
    %81 = vperm.xlu0 %80, %v37
    %v82 = vpop.permute.xlu0 %81
    %83 = vset.pattern.permute.xlu0 0
    %84 = vperm.xlu0 %83, %v38
    %v85 = vpop.permute.xlu0 %84
    %86 = vset.pattern.permute.xlu0 0
    %87 = vperm.xlu0 %86, %v39
    %v88 = vpop.permute.xlu0 %87
    %89 = vset.pattern.permute.xlu0 0
    %90 = vperm.xlu0 %89, %v40
    %v91 = vpop.permute.xlu0 %90
    %92 = vset.pattern.permute.xlu0 0
    %93 = vperm.xlu0 %92, %v41
    %v94 = vpop.permute.xlu0 %93
    %95 = vset.pattern.permute.xlu0 0
    %96 = vperm.xlu0 %95, %v42
    %v97 = vpop.permute.xlu0 %96
    %98 = vset.pattern.permute.xlu0 0
    %99 = vperm.xlu0 %98, %v43
    %v100 = vpop.permute.xlu0 %99
    %101 = vset.pattern.permute.xlu0 0
    %102 = vperm.xlu0 %101, %v44
    %v103 = vpop.permute.xlu0 %102
    %104 = vset.pattern.permute.xlu0 0
    %105 = vperm.xlu0 %104, %v45
    %v106 = vpop.permute.xlu0 %105
    %107 = vset.pattern.permute.xlu0 0
    %108 = vperm.xlu0 %107, %v46
    %v109 = vpop.permute.xlu0 %108
    %110 = vset.pattern.permute.xlu0 0
    %111 = vperm.xlu0 %110, %v47
    %v112 = vpop.permute.xlu0 %111
    %113 = vset.pattern.permute.xlu0 0
    %114 = vperm.xlu0 %113, %v48
    %v115 = vpop.permute.xlu0 %114
    %116 = vset.pattern.permute.xlu0 0
    %117 = vperm.xlu0 %116, %v49
    %v118 = vpop.permute.xlu0 %117
    %119 = vset.pattern.permute.xlu0 0
    %120 = vperm.xlu0 %119, %v50
    %v121 = vpop.permute.xlu0 %120
    %122 = vset.pattern.permute.xlu0 0
    %123 = vperm.xlu0 %122, %v51
    %v124 = vpop.permute.xlu0 %123
    %125 = vset.pattern.permute.xlu0 0
    %126 = vperm.xlu0 %125, %v52
    %v127 = vpop.permute.xlu0 %126
    %128 = vset.pattern.permute.xlu0 0
    %129 = vperm.xlu0 %128, %v53
    %v130 = vpop.permute.xlu0 %129
    %131 = vset.pattern.permute.xlu0 0
    %132 = vperm.xlu0 %131, %v54
    %v133 = vpop.permute.xlu0 %132
    %134 = vset.pattern.permute.xlu0 0
    %135 = vperm.xlu0 %134, %v55
    %v136 = vpop.permute.xlu0 %135
    %137 = vset.pattern.permute.xlu0 0
    %138 = vperm.xlu0 %137, %v56
    %v139 = vpop.permute.xlu0 %138
    %140 = vset.pattern.permute.xlu0 0
    %141 = vperm.xlu0 %140, %v57
    %v142 = vpop.permute.xlu0 %141
    %143 = vset.pattern.permute.xlu0 0
    %144 = vperm.xlu0 %143, %v58
    %v145 = vpop.permute.xlu0 %144
    %146 = vset.pattern.permute.xlu0 0
    %147 = vperm.xlu0 %146, %v59
    %v148 = vpop.permute.xlu0 %147
    %149 = vset.pattern.permute.xlu0 0
    %150 = vperm.xlu0 %149, %v60
    %v151 = vpop.permute.xlu0 %150
    %152 = vset.pattern.permute.xlu0 0
    %153 = vperm.xlu0 %152, %v61
    %v154 = vpop.permute.xlu0 %153
    %155 = vset.pattern.permute.xlu0 0
    %156 = vperm.xlu0 %155, %v62
    %v157 = vpop.permute.xlu0 %156
    %158 = vset.pattern.permute.xlu0 0
    %159 = vperm.xlu0 %158, %v63
    %v160 = vpop.permute.xlu0 %159
    %161 = vset.pattern.permute.xlu0 0
    %162 = vperm.xlu0 %161, %v64
    %v163 = vpop.permute.xlu0 %162
    %vm164 = vcmp.eq.s32.totalorder %v66, %v70
    %vm165 = vcmp.eq.s32.totalorder %v67, %v70
    %vm166 = vcmp.eq.s32.totalorder %v66, %v73
    %vm167 = vcmp.eq.s32.totalorder %v67, %v73
    %vm168 = vcmp.eq.s32.totalorder %v66, %v76
    %vm169 = vcmp.eq.s32.totalorder %v67, %v76
    %vm170 = vcmp.eq.s32.totalorder %v66, %v79
    %vm171 = vcmp.eq.s32.totalorder %v67, %v79
    %vm172 = vcmp.eq.s32.totalorder %v66, %v82
    %vm173 = vcmp.eq.s32.totalorder %v67, %v82
    %vm174 = vcmp.eq.s32.totalorder %v66, %v85
    %vm175 = vcmp.eq.s32.totalorder %v67, %v85
    %vm176 = vcmp.eq.s32.totalorder %v66, %v88
    %vm177 = vcmp.eq.s32.totalorder %v67, %v88
    %vm178 = vcmp.eq.s32.totalorder %v66, %v91
    %vm179 = vcmp.eq.s32.totalorder %v67, %v91
    %vm180 = vcmp.eq.s32.totalorder %v66, %v94
    %vm181 = vcmp.eq.s32.totalorder %v67, %v94
    %vm182 = vcmp.eq.s32.totalorder %v66, %v97
    %vm183 = vcmp.eq.s32.totalorder %v67, %v97
    %vm184 = vcmp.eq.s32.totalorder %v66, %v100
    %vm185 = vcmp.eq.s32.totalorder %v67, %v100
    %vm186 = vcmp.eq.s32.totalorder %v66, %v103
    %vm187 = vcmp.eq.s32.totalorder %v67, %v103
    %vm188 = vcmp.eq.s32.totalorder %v66, %v106
    %vm189 = vcmp.eq.s32.totalorder %v67, %v106
    %vm190 = vcmp.eq.s32.totalorder %v66, %v109
    %vm191 = vcmp.eq.s32.totalorder %v67, %v109
    %vm192 = vcmp.eq.s32.totalorder %v66, %v112
    %vm193 = vcmp.eq.s32.totalorder %v67, %v112
    %vm194 = vcmp.eq.s32.totalorder %v66, %v115
    %vm195 = vcmp.eq.s32.totalorder %v67, %v115
    %vm196 = vcmp.eq.s32.totalorder %v66, %v118
    %vm197 = vcmp.eq.s32.totalorder %v67, %v118
    %vm198 = vcmp.eq.s32.totalorder %v66, %v121
    %vm199 = vcmp.eq.s32.totalorder %v67, %v121
    %vm200 = vcmp.eq.s32.totalorder %v66, %v124
    %vm201 = vcmp.eq.s32.totalorder %v67, %v124
    %vm202 = vcmp.eq.s32.totalorder %v66, %v127
    %vm203 = vcmp.eq.s32.totalorder %v67, %v127
    %vm204 = vcmp.eq.s32.totalorder %v66, %v130
    %vm205 = vcmp.eq.s32.totalorder %v67, %v130
    %vm206 = vcmp.eq.s32.totalorder %v66, %v133
    %vm207 = vcmp.eq.s32.totalorder %v67, %v133
    %vm208 = vcmp.eq.s32.totalorder %v66, %v136
    %vm209 = vcmp.eq.s32.totalorder %v67, %v136
    %vm210 = vcmp.eq.s32.totalorder %v66, %v139
    %vm211 = vcmp.eq.s32.totalorder %v67, %v139
    %vm212 = vcmp.eq.s32.totalorder %v66, %v142
    %vm213 = vcmp.eq.s32.totalorder %v67, %v142
    %vm214 = vcmp.eq.s32.totalorder %v66, %v145
    %vm215 = vcmp.eq.s32.totalorder %v67, %v145
    %vm216 = vcmp.eq.s32.totalorder %v66, %v148
    %vm217 = vcmp.eq.s32.totalorder %v67, %v148
    %vm218 = vcmp.eq.s32.totalorder %v66, %v151
    %vm219 = vcmp.eq.s32.totalorder %v67, %v151
    %vm220 = vcmp.eq.s32.totalorder %v66, %v154
    %vm221 = vcmp.eq.s32.totalorder %v67, %v154
    %vm222 = vcmp.eq.s32.totalorder %v66, %v157
    %vm223 = vcmp.eq.s32.totalorder %v67, %v157
    %vm224 = vcmp.eq.s32.totalorder %v66, %v160
    %vm225 = vcmp.eq.s32.totalorder %v67, %v160
    %vm226 = vcmp.eq.s32.totalorder %v66, %v163
    %vm227 = vcmp.eq.s32.totalorder %v67, %v163
    %v228 = vsel %vm164, 1, 0
    %v229 = vsel %vm165, 1, 0
    %v230 = vsel %vm166, 1, 0
    %v231 = vsel %vm167, 1, 0
    %v232 = vsel %vm168, 1, 0
    %v233 = vsel %vm169, 1, 0
    %v234 = vsel %vm170, 1, 0
    %v235 = vsel %vm171, 1, 0
    %v236 = vsel %vm172, 1, 0
    %v237 = vsel %vm173, 1, 0
    %v238 = vsel %vm174, 1, 0
    %v239 = vsel %vm175, 1, 0
    %v240 = vsel %vm176, 1, 0
    %v241 = vsel %vm177, 1, 0
    %v242 = vsel %vm178, 1, 0
    %v243 = vsel %vm179, 1, 0
    %v244 = vsel %vm180, 1, 0
    %v245 = vsel %vm181, 1, 0
    %v246 = vsel %vm182, 1, 0
    %v247 = vsel %vm183, 1, 0
    %v248 = vsel %vm184, 1, 0
    %v249 = vsel %vm185, 1, 0
    %v250 = vsel %vm186, 1, 0
    %v251 = vsel %vm187, 1, 0
    %v252 = vsel %vm188, 1, 0
    %v253 = vsel %vm189, 1, 0
    %v254 = vsel %vm190, 1, 0
    %v255 = vsel %vm191, 1, 0
    %v256 = vsel %vm192, 1, 0
    %v257 = vsel %vm193, 1, 0
    %v258 = vsel %vm194, 1, 0
    %v259 = vsel %vm195, 1, 0
    %v260 = vsel %vm196, 1, 0
    %v261 = vsel %vm197, 1, 0
    %v262 = vsel %vm198, 1, 0
    %v263 = vsel %vm199, 1, 0
    %v264 = vsel %vm200, 1, 0
    %v265 = vsel %vm201, 1, 0
    %v266 = vsel %vm202, 1, 0
    %v267 = vsel %vm203, 1, 0
    %v268 = vsel %vm204, 1, 0
    %v269 = vsel %vm205, 1, 0
    %v270 = vsel %vm206, 1, 0
    %v271 = vsel %vm207, 1, 0
    %v272 = vsel %vm208, 1, 0
    %v273 = vsel %vm209, 1, 0
    %v274 = vsel %vm210, 1, 0
    %v275 = vsel %vm211, 1, 0
    %v276 = vsel %vm212, 1, 0
    %v277 = vsel %vm213, 1, 0
    %v278 = vsel %vm214, 1, 0
    %v279 = vsel %vm215, 1, 0
    %v280 = vsel %vm216, 1, 0
    %v281 = vsel %vm217, 1, 0
    %v282 = vsel %vm218, 1, 0
    %v283 = vsel %vm219, 1, 0
    %v284 = vsel %vm220, 1, 0
    %v285 = vsel %vm221, 1, 0
    %v286 = vsel %vm222, 1, 0
    %v287 = vsel %vm223, 1, 0
    %v288 = vsel %vm224, 1, 0
    %v289 = vsel %vm225, 1, 0
    %v290 = vsel %vm226, 1, 0
    %v291 = vsel %vm227, 1, 0
    %v292 = vcvt.s32.f32 %v228
    %v293 = vcvt.s32.f32 %v229
    %v294 = vcvt.s32.f32 %v230
    %v295 = vcvt.s32.f32 %v231
    %v296 = vcvt.s32.f32 %v232
    %v297 = vcvt.s32.f32 %v233
    %v298 = vcvt.s32.f32 %v234
    %v299 = vcvt.s32.f32 %v235
    %v300 = vcvt.s32.f32 %v236
    %v301 = vcvt.s32.f32 %v237
    %v302 = vcvt.s32.f32 %v238
    %v303 = vcvt.s32.f32 %v239
    %v304 = vcvt.s32.f32 %v240
    %v305 = vcvt.s32.f32 %v241
    %v306 = vcvt.s32.f32 %v242
    %v307 = vcvt.s32.f32 %v243
    %v308 = vcvt.s32.f32 %v244
    %v309 = vcvt.s32.f32 %v245
    %v310 = vcvt.s32.f32 %v246
    %v311 = vcvt.s32.f32 %v247
    %v312 = vcvt.s32.f32 %v248
    %v313 = vcvt.s32.f32 %v249
    %v314 = vcvt.s32.f32 %v250
    %v315 = vcvt.s32.f32 %v251
    %v316 = vcvt.s32.f32 %v252
    %v317 = vcvt.s32.f32 %v253
    %v318 = vcvt.s32.f32 %v254
    %v319 = vcvt.s32.f32 %v255
    %v320 = vcvt.s32.f32 %v256
    %v321 = vcvt.s32.f32 %v257
    %v322 = vcvt.s32.f32 %v258
    %v323 = vcvt.s32.f32 %v259
    %v324 = vcvt.s32.f32 %v260
    %v325 = vcvt.s32.f32 %v261
    %v326 = vcvt.s32.f32 %v262
    %v327 = vcvt.s32.f32 %v263
    %v328 = vcvt.s32.f32 %v264
    %v329 = vcvt.s32.f32 %v265
    %v330 = vcvt.s32.f32 %v266
    %v331 = vcvt.s32.f32 %v267
    %v332 = vcvt.s32.f32 %v268
    %v333 = vcvt.s32.f32 %v269
    %v334 = vcvt.s32.f32 %v270
    %v335 = vcvt.s32.f32 %v271
    %v336 = vcvt.s32.f32 %v272
    %v337 = vcvt.s32.f32 %v273
    %v338 = vcvt.s32.f32 %v274
    %v339 = vcvt.s32.f32 %v275
    %v340 = vcvt.s32.f32 %v276
    %v341 = vcvt.s32.f32 %v277
    %v342 = vcvt.s32.f32 %v278
    %v343 = vcvt.s32.f32 %v279
    %v344 = vcvt.s32.f32 %v280
    %v345 = vcvt.s32.f32 %v281
    %v346 = vcvt.s32.f32 %v282
    %v347 = vcvt.s32.f32 %v283
    %v348 = vcvt.s32.f32 %v284
    %v349 = vcvt.s32.f32 %v285
    %v350 = vcvt.s32.f32 %v286
    %v351 = vcvt.s32.f32 %v287
    %v352 = vcvt.s32.f32 %v288
    %v353 = vcvt.s32.f32 %v289
    %v354 = vcvt.s32.f32 %v290
    %v355 = vcvt.s32.f32 %v291
    %v356 = vpack.c.bf16 %v294, %v292
    %v357 = vpack.c.bf16 %v295, %v293
    %v358 = vpack.c.bf16 %v298, %v296
    %v359 = vpack.c.bf16 %v299, %v297
    %v360 = vpack.c.bf16 %v302, %v300
    %v361 = vpack.c.bf16 %v303, %v301
    %v362 = vpack.c.bf16 %v306, %v304
    %v363 = vpack.c.bf16 %v307, %v305
    %v364 = vpack.c.bf16 %v310, %v308
    %v365 = vpack.c.bf16 %v311, %v309
    %v366 = vpack.c.bf16 %v314, %v312
    %v367 = vpack.c.bf16 %v315, %v313
    %v368 = vpack.c.bf16 %v318, %v316
    %v369 = vpack.c.bf16 %v319, %v317
    %v370 = vpack.c.bf16 %v322, %v320
    %v371 = vpack.c.bf16 %v323, %v321
    %v372 = vpack.c.bf16 %v326, %v324
    %v373 = vpack.c.bf16 %v327, %v325
    %v374 = vpack.c.bf16 %v330, %v328
    %v375 = vpack.c.bf16 %v331, %v329
    %v376 = vpack.c.bf16 %v334, %v332
    %v377 = vpack.c.bf16 %v335, %v333
    %v378 = vpack.c.bf16 %v338, %v336
    %v379 = vpack.c.bf16 %v339, %v337
    %v380 = vpack.c.bf16 %v342, %v340
    %v381 = vpack.c.bf16 %v343, %v341
    %v382 = vpack.c.bf16 %v346, %v344
    %v383 = vpack.c.bf16 %v347, %v345
    %v384 = vpack.c.bf16 %v350, %v348
    %v385 = vpack.c.bf16 %v351, %v349
    %v386 = vpack.c.bf16 %v354, %v352
    %v387 = vpack.c.bf16 %v355, %v353
    %v388 = vld [vmem:[%s1] sm:$0xf]
    %v389 = vld [vmem:[%s1 + $0x4] sm:$0xf]
    %v390 = vld [vmem:[%s1 + $0x8] sm:$0xf]
    %v391 = vld [vmem:[%s1 + $0xc] sm:$0xf]
    %v392 = vld [vmem:[%s1 + $0x10] sm:$0xf]
    %v393 = vld [vmem:[%s1 + $0x14] sm:$0xf]
    %v394 = vld [vmem:[%s1 + $0x18] sm:$0xf]
    %v395 = vld [vmem:[%s1 + $0x1c] sm:$0xf]
    %v396 = vld [vmem:[%s1 + $0x20] sm:$0xf]
    %v397 = vld [vmem:[%s1 + $0x24] sm:$0xf]
    %v398 = vld [vmem:[%s1 + $0x28] sm:$0xf]
    %v399 = vld [vmem:[%s1 + $0x2c] sm:$0xf]
    %v400 = vld [vmem:[%s1 + $0x30] sm:$0xf]
    %v401 = vld [vmem:[%s1 + $0x34] sm:$0xf]
    %v402 = vld [vmem:[%s1 + $0x38] sm:$0xf]
    %v403 = vld [vmem:[%s1 + $0x3c] sm:$0xf]
    %v404 = vld [vmem:[%s1 + $0x40] sm:$0xf]
    %v405 = vld [vmem:[%s1 + $0x44] sm:$0xf]
    %v406 = vld [vmem:[%s1 + $0x48] sm:$0xf]
    %v407 = vld [vmem:[%s1 + $0x4c] sm:$0xf]
    %v408 = vld [vmem:[%s1 + $0x50] sm:$0xf]
    %v409 = vld [vmem:[%s1 + $0x54] sm:$0xf]
    %v410 = vld [vmem:[%s1 + $0x58] sm:$0xf]
    %v411 = vld [vmem:[%s1 + $0x5c] sm:$0xf]
    %v412 = vld [vmem:[%s1 + $0x60] sm:$0xf]
    %v413 = vld [vmem:[%s1 + $0x64] sm:$0xf]
    %v414 = vld [vmem:[%s1 + $0x68] sm:$0xf]
    %v415 = vld [vmem:[%s1 + $0x6c] sm:$0xf]
    %v416 = vld [vmem:[%s1 + $0x70] sm:$0xf]
    %v417 = vld [vmem:[%s1 + $0x74] sm:$0xf]
    %v418 = vld [vmem:[%s1 + $0x78] sm:$0xf]
    %v419 = vld [vmem:[%s1 + $0x7c] sm:$0xf]
    %v420 = vld [vmem:[%s2] sm:$0xf]
    %v421 = vld [vmem:[%s2 + $0x4] sm:$0xf]
    %v422 = vld [vmem:[%s2 + $0x8] sm:$0xf]
    %v423 = vld [vmem:[%s2 + $0xc] sm:$0xf]
    %v424 = vld [vmem:[%s2 + $0x10] sm:$0xf]
    %v425 = vld [vmem:[%s2 + $0x14] sm:$0xf]
    %v426 = vld [vmem:[%s2 + $0x18] sm:$0xf]
    %v427 = vld [vmem:[%s2 + $0x1c] sm:$0xf]
    %v428 = vld [vmem:[%s2 + $0x20] sm:$0xf]
    %v429 = vld [vmem:[%s2 + $0x24] sm:$0xf]
    %v430 = vld [vmem:[%s2 + $0x28] sm:$0xf]
    %v431 = vld [vmem:[%s2 + $0x2c] sm:$0xf]
    %v432 = vld [vmem:[%s2 + $0x30] sm:$0xf]
    %v433 = vld [vmem:[%s2 + $0x34] sm:$0xf]
    %v434 = vld [vmem:[%s2 + $0x38] sm:$0xf]
    %v435 = vld [vmem:[%s2 + $0x3c] sm:$0xf]
    %v436 = vld [vmem:[%s2 + $0x40] sm:$0xf]
    %v437 = vld [vmem:[%s2 + $0x44] sm:$0xf]
    %v438 = vld [vmem:[%s2 + $0x48] sm:$0xf]
    %v439 = vld [vmem:[%s2 + $0x4c] sm:$0xf]
    %v440 = vld [vmem:[%s2 + $0x50] sm:$0xf]
    %v441 = vld [vmem:[%s2 + $0x54] sm:$0xf]
    %v442 = vld [vmem:[%s2 + $0x58] sm:$0xf]
    %v443 = vld [vmem:[%s2 + $0x5c] sm:$0xf]
    %v444 = vld [vmem:[%s2 + $0x60] sm:$0xf]
    %v445 = vld [vmem:[%s2 + $0x64] sm:$0xf]
    %v446 = vld [vmem:[%s2 + $0x68] sm:$0xf]
    %v447 = vld [vmem:[%s2 + $0x6c] sm:$0xf]
    %v448 = vld [vmem:[%s2 + $0x70] sm:$0xf]
    %v449 = vld [vmem:[%s2 + $0x74] sm:$0xf]
    %v450 = vld [vmem:[%s2 + $0x78] sm:$0xf]
    %v451 = vld [vmem:[%s2 + $0x7c] sm:$0xf]
    %v484 = vunpack.c.l.b16 %v420
    %v485 = vunpack.c.l.b16 %v421
    %v486 = vunpack.c.l.b16 %v422
    %v487 = vunpack.c.l.b16 %v423
    %v488 = vunpack.c.l.b16 %v424
    %v489 = vunpack.c.l.b16 %v425
    %v490 = vunpack.c.l.b16 %v426
    %v491 = vunpack.c.l.b16 %v427
    %v492 = vunpack.c.l.b16 %v428
    %v493 = vunpack.c.l.b16 %v429
    %v494 = vunpack.c.l.b16 %v430
    %v495 = vunpack.c.l.b16 %v431
    %v496 = vunpack.c.l.b16 %v432
    %v497 = vunpack.c.l.b16 %v433
    %v498 = vunpack.c.l.b16 %v434
    %v499 = vunpack.c.l.b16 %v435
    %v500 = vunpack.c.l.b16 %v436
    %v501 = vunpack.c.l.b16 %v437
    %v502 = vunpack.c.l.b16 %v438
    %v503 = vunpack.c.l.b16 %v439
    %v504 = vunpack.c.l.b16 %v440
    %v505 = vunpack.c.l.b16 %v441
    %v506 = vunpack.c.l.b16 %v442
    %v507 = vunpack.c.l.b16 %v443
    %v508 = vunpack.c.l.b16 %v444
    %v509 = vunpack.c.l.b16 %v445
    %v510 = vunpack.c.l.b16 %v446
    %v511 = vunpack.c.l.b16 %v447
    %v512 = vunpack.c.l.b16 %v448
    %v513 = vunpack.c.l.b16 %v449
    %v514 = vunpack.c.l.b16 %v450
    %v515 = vunpack.c.l.b16 %v451
    %v516 = vpack.c.b16 %v485, %v484
    %v517 = vpack.c.b16 %v487, %v486
    %v518 = vpack.c.b16 %v489, %v488
    %v519 = vpack.c.b16 %v491, %v490
    %v520 = vpack.c.b16 %v493, %v492
    %v521 = vpack.c.b16 %v495, %v494
    %v522 = vpack.c.b16 %v497, %v496
    %v523 = vpack.c.b16 %v499, %v498
    %v524 = vpack.c.b16 %v501, %v500
    %v525 = vpack.c.b16 %v503, %v502
    %v526 = vpack.c.b16 %v505, %v504
    %v527 = vpack.c.b16 %v507, %v506
    %v528 = vpack.c.b16 %v509, %v508
    %v529 = vpack.c.b16 %v511, %v510
    %v530 = vpack.c.b16 %v513, %v512
    %v531 = vpack.c.b16 %v515, %v514
    %548 = vmatprep.subr.bf16.mxu0 0
    %549 = vmatpush1.bf16.msra.mxu0 %v516
    %550 = vmatprep.subr.bf16.mxu0 0
    %551 = vmatpush1.bf16.msra.mxu0 %v517
    %552 = vmatprep.subr.bf16.mxu0 0
    %553 = vmatpush1.bf16.msra.mxu0 %v518
    %554 = vmatprep.subr.bf16.mxu0 0
    %555 = vmatpush1.bf16.msra.mxu0 %v519
    %556 = vmatprep.subr.bf16.mxu0 0
    %557 = vmatpush1.bf16.msra.mxu0 %v520
    %558 = vmatprep.subr.bf16.mxu0 0
    %559 = vmatpush1.bf16.msra.mxu0 %v521
    %560 = vmatprep.subr.bf16.mxu0 0
    %561 = vmatpush1.bf16.msra.mxu0 %v522
    %562 = vmatprep.subr.bf16.mxu0 0
    %563 = vmatpush1.bf16.msra.mxu0 %v523
    %564 = vmatprep.subr.bf16.mxu0 0
    %565 = vmatpush1.bf16.msra.mxu0 %v524
    %566 = vmatprep.subr.bf16.mxu0 0
    %567 = vmatpush1.bf16.msra.mxu0 %v525
    %568 = vmatprep.subr.bf16.mxu0 0
    %569 = vmatpush1.bf16.msra.mxu0 %v526
    %570 = vmatprep.subr.bf16.mxu0 0
    %571 = vmatpush1.bf16.msra.mxu0 %v527
    %572 = vmatprep.subr.bf16.mxu0 0
    %573 = vmatpush1.bf16.msra.mxu0 %v528
    %574 = vmatprep.subr.bf16.mxu0 0
    %575 = vmatpush1.bf16.msra.mxu0 %v529
    %576 = vmatprep.subr.bf16.mxu0 0
    %577 = vmatpush1.bf16.msra.mxu0 %v530
    %578 = vmatprep.subr.bf16.mxu0 0
    %579 = vmatpush1.bf16.msra.mxu0 %v531
    %580 = vmatprep.mubr.bf16.mxu0 %v357
    %581 = vmatmul.mubr.bf16.gmra.mrb[0].mxu0 %v356
    %v582 = vpop.f32.mrb[0].mxu0
    %v583 = vadd.f32 0.0, %v582
    %v584 = vpop.f32.mrb[0].mxu0
    %v585 = vpop.f32.mrb[0].mxu0
    %v586 = vadd.f32 0.0, %v585
    %v587 = vpop.f32.mrb[0].mxu0
    %588 = vmatprep.mubr.bf16.mxu0 %v359
    %589 = vmatmul.mubr.bf16.gmra.mrb[0].mxu0 %v358
    %v590 = vpop.f32.mrb[0].mxu0
    %v591 = vadd.f32 0.0, %v590
    %v592 = vpop.f32.mrb[0].mxu0
    %v593 = vpop.f32.mrb[0].mxu0
    %v594 = vadd.f32 0.0, %v593
    %v595 = vpop.f32.mrb[0].mxu0
    %596 = vmatprep.mubr.bf16.mxu0 %v361
    %597 = vmatmul.mubr.bf16.gmra.mrb[0].mxu0 %v360
    %v598 = vpop.f32.mrb[0].mxu0
    %v599 = vadd.f32 0.0, %v598
    %v600 = vpop.f32.mrb[0].mxu0
    %v601 = vpop.f32.mrb[0].mxu0
    %v602 = vadd.f32 0.0, %v601
    %v603 = vpop.f32.mrb[0].mxu0
    %604 = vmatprep.mubr.bf16.mxu0 %v363
    %605 = vmatmul.mubr.bf16.gmra.mrb[0].mxu0 %v362
    %v606 = vpop.f32.mrb[0].mxu0
    %v607 = vadd.f32 0.0, %v606
    %v608 = vpop.f32.mrb[0].mxu0
    %v609 = vpop.f32.mrb[0].mxu0
    %v610 = vadd.f32 0.0, %v609
    %v611 = vpop.f32.mrb[0].mxu0
    %612 = vmatprep.mubr.bf16.mxu0 %v365
    %613 = vmatmul.mubr.bf16.gmra.mrb[0].mxu0 %v364
    %v614 = vpop.f32.mrb[0].mxu0
    %v615 = vadd.f32 0.0, %v614
    %v616 = vpop.f32.mrb[0].mxu0
    %v617 = vpop.f32.mrb[0].mxu0
    %v618 = vadd.f32 0.0, %v617
    %v619 = vpop.f32.mrb[0].mxu0
    %620 = vmatprep.mubr.bf16.mxu0 %v367
    %621 = vmatmul.mubr.bf16.gmra.mrb[0].mxu0 %v366
    %v622 = vpop.f32.mrb[0].mxu0
    %v623 = vadd.f32 0.0, %v622
    %v624 = vpop.f32.mrb[0].mxu0
    %v625 = vpop.f32.mrb[0].mxu0
    %v626 = vadd.f32 0.0, %v625
    %v627 = vpop.f32.mrb[0].mxu0
    %628 = vmatprep.mubr.bf16.mxu0 %v369
    %629 = vmatmul.mubr.bf16.gmra.mrb[0].mxu0 %v368
    %v630 = vpop.f32.mrb[0].mxu0
    %v631 = vadd.f32 0.0, %v630
    %v632 = vpop.f32.mrb[0].mxu0
    %v633 = vpop.f32.mrb[0].mxu0
    %v634 = vadd.f32 0.0, %v633
    %v635 = vpop.f32.mrb[0].mxu0
    %636 = vmatprep.mubr.bf16.mxu0 %v371
    %637 = vmatmul.mubr.bf16.gmra.mrb[0].mxu0 %v370
    %v638 = vpop.f32.mrb[0].mxu0
    %v639 = vadd.f32 0.0, %v638
    %v640 = vpop.f32.mrb[0].mxu0
    %v641 = vpop.f32.mrb[0].mxu0
    %v642 = vadd.f32 0.0, %v641
    %v643 = vpop.f32.mrb[0].mxu0
    %644 = vmatprep.mubr.bf16.mxu0 %v373
    %645 = vmatmul.mubr.bf16.gmra.mrb[0].mxu0 %v372
    %v646 = vpop.f32.mrb[0].mxu0
    %v647 = vadd.f32 0.0, %v646
    %v648 = vpop.f32.mrb[0].mxu0
    %v649 = vpop.f32.mrb[0].mxu0
    %v650 = vadd.f32 0.0, %v649
    %v651 = vpop.f32.mrb[0].mxu0
    %652 = vmatprep.mubr.bf16.mxu0 %v375
    %653 = vmatmul.mubr.bf16.gmra.mrb[0].mxu0 %v374
    %v654 = vpop.f32.mrb[0].mxu0
    %v655 = vadd.f32 0.0, %v654
    %v656 = vpop.f32.mrb[0].mxu0
    %v657 = vpop.f32.mrb[0].mxu0
    %v658 = vadd.f32 0.0, %v657
    %v659 = vpop.f32.mrb[0].mxu0
    %660 = vmatprep.mubr.bf16.mxu0 %v377
    %661 = vmatmul.mubr.bf16.gmra.mrb[0].mxu0 %v376
    %v662 = vpop.f32.mrb[0].mxu0
    %v663 = vadd.f32 0.0, %v662
    %v664 = vpop.f32.mrb[0].mxu0
    %v665 = vpop.f32.mrb[0].mxu0
    %v666 = vadd.f32 0.0, %v665
    %v667 = vpop.f32.mrb[0].mxu0
    %668 = vmatprep.mubr.bf16.mxu0 %v379
    %669 = vmatmul.mubr.bf16.gmra.mrb[0].mxu0 %v378
    %v670 = vpop.f32.mrb[0].mxu0
    %v671 = vadd.f32 0.0, %v670
    %v672 = vpop.f32.mrb[0].mxu0
    %v673 = vpop.f32.mrb[0].mxu0
    %v674 = vadd.f32 0.0, %v673
    %v675 = vpop.f32.mrb[0].mxu0
    %676 = vmatprep.mubr.bf16.mxu0 %v381
    %677 = vmatmul.mubr.bf16.gmra.mrb[0].mxu0 %v380
    %v678 = vpop.f32.mrb[0].mxu0
    %v679 = vadd.f32 0.0, %v678
    %v680 = vpop.f32.mrb[0].mxu0
    %v681 = vpop.f32.mrb[0].mxu0
    %v682 = vadd.f32 0.0, %v681
    %v683 = vpop.f32.mrb[0].mxu0
    %684 = vmatprep.mubr.bf16.mxu0 %v383
    %685 = vmatmul.mubr.bf16.gmra.mrb[0].mxu0 %v382
    %v686 = vpop.f32.mrb[0].mxu0
    %v687 = vadd.f32 0.0, %v686
    %v688 = vpop.f32.mrb[0].mxu0
    %v689 = vpop.f32.mrb[0].mxu0
    %v690 = vadd.f32 0.0, %v689
    %v691 = vpop.f32.mrb[0].mxu0
    %692 = vmatprep.mubr.bf16.mxu0 %v385
    %693 = vmatmul.mubr.bf16.gmra.mrb[0].mxu0 %v384
    %v694 = vpop.f32.mrb[0].mxu0
    %v695 = vadd.f32 0.0, %v694
    %v696 = vpop.f32.mrb[0].mxu0
    %v697 = vpop.f32.mrb[0].mxu0
    %v698 = vadd.f32 0.0, %v697
    %v699 = vpop.f32.mrb[0].mxu0
    %700 = vmatprep.mubr.bf16.mxu0 %v387
    %701 = vmatmul.mubr.bf16.gmra.mrb[0].mxu0 %v386
    %v702 = vpop.f32.mrb[0].mxu0
    %v703 = vadd.f32 0.0, %v702
    %v704 = vpop.f32.mrb[0].mxu0
    %v705 = vpop.f32.mrb[0].mxu0
    %v706 = vadd.f32 0.0, %v705
    %v707 = vpop.f32.mrb[0].mxu0
    %708 = vdwg.mxu0
    %v741 = vunpack.c.l.b16 %v388
    %v742 = vunpack.c.l.b16 %v389
    %v743 = vunpack.c.l.b16 %v390
    %v744 = vunpack.c.l.b16 %v391
    %v745 = vunpack.c.l.b16 %v392
    %v746 = vunpack.c.l.b16 %v393
    %v747 = vunpack.c.l.b16 %v394
    %v748 = vunpack.c.l.b16 %v395
    %v749 = vunpack.c.l.b16 %v396
    %v750 = vunpack.c.l.b16 %v397
    %v751 = vunpack.c.l.b16 %v398
    %v752 = vunpack.c.l.b16 %v399
    %v753 = vunpack.c.l.b16 %v400
    %v754 = vunpack.c.l.b16 %v401
    %v755 = vunpack.c.l.b16 %v402
    %v756 = vunpack.c.l.b16 %v403
    %v757 = vunpack.c.l.b16 %v404
    %v758 = vunpack.c.l.b16 %v405
    %v759 = vunpack.c.l.b16 %v406
    %v760 = vunpack.c.l.b16 %v407
    %v761 = vunpack.c.l.b16 %v408
    %v762 = vunpack.c.l.b16 %v409
    %v763 = vunpack.c.l.b16 %v410
    %v764 = vunpack.c.l.b16 %v411
    %v765 = vunpack.c.l.b16 %v412
    %v766 = vunpack.c.l.b16 %v413
    %v767 = vunpack.c.l.b16 %v414
    %v768 = vunpack.c.l.b16 %v415
    %v769 = vunpack.c.l.b16 %v416
    %v770 = vunpack.c.l.b16 %v417
    %v771 = vunpack.c.l.b16 %v418
    %v772 = vunpack.c.l.b16 %v419
    %v773 = vpack.c.b16 %v742, %v741
    %v774 = vpack.c.b16 %v744, %v743
    %v775 = vpack.c.b16 %v746, %v745
    %v776 = vpack.c.b16 %v748, %v747
    %v777 = vpack.c.b16 %v750, %v749
    %v778 = vpack.c.b16 %v752, %v751
    %v779 = vpack.c.b16 %v754, %v753
    %v780 = vpack.c.b16 %v756, %v755
    %v781 = vpack.c.b16 %v758, %v757
    %v782 = vpack.c.b16 %v760, %v759
    %v783 = vpack.c.b16 %v762, %v761
    %v784 = vpack.c.b16 %v764, %v763
    %v785 = vpack.c.b16 %v766, %v765
    %v786 = vpack.c.b16 %v768, %v767
    %v787 = vpack.c.b16 %v770, %v769
    %v788 = vpack.c.b16 %v772, %v771
    %805 = vmatprep.subr.bf16.mxu0 0
    %806 = vmatpush1.bf16.msra.mxu0 %v773
    %807 = vmatprep.subr.bf16.mxu0 0
    %808 = vmatpush1.bf16.msra.mxu0 %v774
    %809 = vmatprep.subr.bf16.mxu0 0
    %810 = vmatpush1.bf16.msra.mxu0 %v775
    %811 = vmatprep.subr.bf16.mxu0 0
    %812 = vmatpush1.bf16.msra.mxu0 %v776
    %813 = vmatprep.subr.bf16.mxu0 0
    %814 = vmatpush1.bf16.msra.mxu0 %v777
    %815 = vmatprep.subr.bf16.mxu0 0
    %816 = vmatpush1.bf16.msra.mxu0 %v778
    %817 = vmatprep.subr.bf16.mxu0 0
    %818 = vmatpush1.bf16.msra.mxu0 %v779
    %819 = vmatprep.subr.bf16.mxu0 0
    %820 = vmatpush1.bf16.msra.mxu0 %v780
    %821 = vmatprep.subr.bf16.mxu0 0
    %822 = vmatpush1.bf16.msra.mxu0 %v781
    %823 = vmatprep.subr.bf16.mxu0 0
    %824 = vmatpush1.bf16.msra.mxu0 %v782
    %825 = vmatprep.subr.bf16.mxu0 0
    %826 = vmatpush1.bf16.msra.mxu0 %v783
    %827 = vmatprep.subr.bf16.mxu0 0
    %828 = vmatpush1.bf16.msra.mxu0 %v784
    %829 = vmatprep.subr.bf16.mxu0 0
    %830 = vmatpush1.bf16.msra.mxu0 %v785
    %831 = vmatprep.subr.bf16.mxu0 0
    %832 = vmatpush1.bf16.msra.mxu0 %v786
    %833 = vmatprep.subr.bf16.mxu0 0
    %834 = vmatpush1.bf16.msra.mxu0 %v787
    %835 = vmatprep.subr.bf16.mxu0 0
    %836 = vmatpush1.bf16.msra.mxu0 %v788
    %837 = vmatprep.mubr.bf16.mxu0 %v357
    %838 = vmatmul.mubr.bf16.gmra.mrb[0].mxu0 %v356
    %v839 = vpop.f32.mrb[0].mxu0
    %v840 = vadd.f32 %v583, %v839
    %v841 = vpop.f32.mrb[0].mxu0
    %v842 = vpop.f32.mrb[0].mxu0
    %v843 = vadd.f32 %v586, %v842
    %v844 = vpop.f32.mrb[0].mxu0
    %845 = vmatprep.mubr.bf16.mxu0 %v359
    %846 = vmatmul.mubr.bf16.gmra.mrb[0].mxu0 %v358
    %v847 = vpop.f32.mrb[0].mxu0
    %v848 = vadd.f32 %v591, %v847
    %v849 = vpop.f32.mrb[0].mxu0
    %v850 = vpop.f32.mrb[0].mxu0
    %v851 = vadd.f32 %v594, %v850
    %v852 = vpop.f32.mrb[0].mxu0
    %853 = vmatprep.mubr.bf16.mxu0 %v361
    %854 = vmatmul.mubr.bf16.gmra.mrb[0].mxu0 %v360
    %v855 = vpop.f32.mrb[0].mxu0
    %v856 = vadd.f32 %v599, %v855
    %v857 = vpop.f32.mrb[0].mxu0
    %v858 = vpop.f32.mrb[0].mxu0
    %v859 = vadd.f32 %v602, %v858
    %v860 = vpop.f32.mrb[0].mxu0
    %861 = vmatprep.mubr.bf16.mxu0 %v363
    %862 = vmatmul.mubr.bf16.gmra.mrb[0].mxu0 %v362
    %v863 = vpop.f32.mrb[0].mxu0
    %v864 = vadd.f32 %v607, %v863
    %v865 = vpop.f32.mrb[0].mxu0
    %v866 = vpop.f32.mrb[0].mxu0
    %v867 = vadd.f32 %v610, %v866
    %v868 = vpop.f32.mrb[0].mxu0
    %869 = vmatprep.mubr.bf16.mxu0 %v365
    %870 = vmatmul.mubr.bf16.gmra.mrb[0].mxu0 %v364
    %v871 = vpop.f32.mrb[0].mxu0
    %v872 = vadd.f32 %v615, %v871
    %v873 = vpop.f32.mrb[0].mxu0
    %v874 = vpop.f32.mrb[0].mxu0
    %v875 = vadd.f32 %v618, %v874
    %v876 = vpop.f32.mrb[0].mxu0
    %877 = vmatprep.mubr.bf16.mxu0 %v367
    %878 = vmatmul.mubr.bf16.gmra.mrb[0].mxu0 %v366
    %v879 = vpop.f32.mrb[0].mxu0
    %v880 = vadd.f32 %v623, %v879
    %v881 = vpop.f32.mrb[0].mxu0
    %v882 = vpop.f32.mrb[0].mxu0
    %v883 = vadd.f32 %v626, %v882
    %v884 = vpop.f32.mrb[0].mxu0
    %885 = vmatprep.mubr.bf16.mxu0 %v369
    %886 = vmatmul.mubr.bf16.gmra.mrb[0].mxu0 %v368
    %v887 = vpop.f32.mrb[0].mxu0
    %v888 = vadd.f32 %v631, %v887
    %v889 = vpop.f32.mrb[0].mxu0
    %v890 = vpop.f32.mrb[0].mxu0
    %v891 = vadd.f32 %v634, %v890
    %v892 = vpop.f32.mrb[0].mxu0
    %893 = vmatprep.mubr.bf16.mxu0 %v371
    %894 = vmatmul.mubr.bf16.gmra.mrb[0].mxu0 %v370
    %v895 = vpop.f32.mrb[0].mxu0
    %v896 = vadd.f32 %v639, %v895
    %v897 = vpop.f32.mrb[0].mxu0
    %v898 = vpop.f32.mrb[0].mxu0
    %v899 = vadd.f32 %v642, %v898
    %v900 = vpop.f32.mrb[0].mxu0
    %901 = vmatprep.mubr.bf16.mxu0 %v373
    %902 = vmatmul.mubr.bf16.gmra.mrb[0].mxu0 %v372
    %v903 = vpop.f32.mrb[0].mxu0
    %v904 = vadd.f32 %v647, %v903
    %v905 = vpop.f32.mrb[0].mxu0
    %v906 = vpop.f32.mrb[0].mxu0
    %v907 = vadd.f32 %v650, %v906
    %v908 = vpop.f32.mrb[0].mxu0
    %909 = vmatprep.mubr.bf16.mxu0 %v375
    %910 = vmatmul.mubr.bf16.gmra.mrb[0].mxu0 %v374
    %v911 = vpop.f32.mrb[0].mxu0
    %v912 = vadd.f32 %v655, %v911
    %v913 = vpop.f32.mrb[0].mxu0
    %v914 = vpop.f32.mrb[0].mxu0
    %v915 = vadd.f32 %v658, %v914
    %v916 = vpop.f32.mrb[0].mxu0
    %917 = vmatprep.mubr.bf16.mxu0 %v377
    %918 = vmatmul.mubr.bf16.gmra.mrb[0].mxu0 %v376
    %v919 = vpop.f32.mrb[0].mxu0
    %v920 = vadd.f32 %v663, %v919
    %v921 = vpop.f32.mrb[0].mxu0
    %v922 = vpop.f32.mrb[0].mxu0
    %v923 = vadd.f32 %v666, %v922
    %v924 = vpop.f32.mrb[0].mxu0
    %925 = vmatprep.mubr.bf16.mxu0 %v379
    %926 = vmatmul.mubr.bf16.gmra.mrb[0].mxu0 %v378
    %v927 = vpop.f32.mrb[0].mxu0
    %v928 = vadd.f32 %v671, %v927
    %v929 = vpop.f32.mrb[0].mxu0
    %v930 = vpop.f32.mrb[0].mxu0
    %v931 = vadd.f32 %v674, %v930
    %v932 = vpop.f32.mrb[0].mxu0
    %933 = vmatprep.mubr.bf16.mxu0 %v381
    %934 = vmatmul.mubr.bf16.gmra.mrb[0].mxu0 %v380
    %v935 = vpop.f32.mrb[0].mxu0
    %v936 = vadd.f32 %v679, %v935
    %v937 = vpop.f32.mrb[0].mxu0
    %v938 = vpop.f32.mrb[0].mxu0
    %v939 = vadd.f32 %v682, %v938
    %v940 = vpop.f32.mrb[0].mxu0
    %941 = vmatprep.mubr.bf16.mxu0 %v383
    %942 = vmatmul.mubr.bf16.gmra.mrb[0].mxu0 %v382
    %v943 = vpop.f32.mrb[0].mxu0
    %v944 = vadd.f32 %v687, %v943
    %v945 = vpop.f32.mrb[0].mxu0
    %v946 = vpop.f32.mrb[0].mxu0
    %v947 = vadd.f32 %v690, %v946
    %v948 = vpop.f32.mrb[0].mxu0
    %949 = vmatprep.mubr.bf16.mxu0 %v385
    %950 = vmatmul.mubr.bf16.gmra.mrb[0].mxu0 %v384
    %v951 = vpop.f32.mrb[0].mxu0
    %v952 = vadd.f32 %v695, %v951
    %v953 = vpop.f32.mrb[0].mxu0
    %v954 = vpop.f32.mrb[0].mxu0
    %v955 = vadd.f32 %v698, %v954
    %v956 = vpop.f32.mrb[0].mxu0
    %957 = vmatprep.mubr.bf16.mxu0 %v387
    %958 = vmatmul.mubr.bf16.gmra.mrb[0].mxu0 %v386
    %v959 = vpop.f32.mrb[0].mxu0
    %v960 = vadd.f32 %v703, %v959
    %v961 = vpop.f32.mrb[0].mxu0
    %v962 = vpop.f32.mrb[0].mxu0
    %v963 = vadd.f32 %v706, %v962
    %v964 = vpop.f32.mrb[0].mxu0
    %965 = vdwg.mxu0
    %v966 = vld [vmem:[#allocation2] sm:$0xf]
    %v967 = vld [vmem:[#allocation2 + $0x4] sm:$0xf]
    %v968 = vld [vmem:[#allocation2 + $0x8] sm:$0xf]
    %v969 = vld [vmem:[#allocation2 + $0xc] sm:$0xf]
    %v970 = vld [vmem:[#allocation2 + $0x10] sm:$0xf]
    %v971 = vld [vmem:[#allocation2 + $0x14] sm:$0xf]
    %v972 = vld [vmem:[#allocation2 + $0x18] sm:$0xf]
    %v973 = vld [vmem:[#allocation2 + $0x1c] sm:$0xf]
    %v974 = vld [vmem:[#allocation2 + $0x20] sm:$0xf]
    %v975 = vld [vmem:[#allocation2 + $0x24] sm:$0xf]
    %v976 = vld [vmem:[#allocation2 + $0x28] sm:$0xf]
    %v977 = vld [vmem:[#allocation2 + $0x2c] sm:$0xf]
    %v978 = vld [vmem:[#allocation2 + $0x30] sm:$0xf]
    %v979 = vld [vmem:[#allocation2 + $0x34] sm:$0xf]
    %v980 = vld [vmem:[#allocation2 + $0x38] sm:$0xf]
    %v981 = vld [vmem:[#allocation2 + $0x3c] sm:$0xf]
    %v982 = vld [vmem:[#allocation2 + $0x40] sm:$0xf]
    %v983 = vld [vmem:[#allocation2 + $0x44] sm:$0xf]
    %v984 = vld [vmem:[#allocation2 + $0x48] sm:$0xf]
    %v985 = vld [vmem:[#allocation2 + $0x4c] sm:$0xf]
    %v986 = vld [vmem:[#allocation2 + $0x50] sm:$0xf]
    %v987 = vld [vmem:[#allocation2 + $0x54] sm:$0xf]
    %v988 = vld [vmem:[#allocation2 + $0x58] sm:$0xf]
    %v989 = vld [vmem:[#allocation2 + $0x5c] sm:$0xf]
    %v990 = vld [vmem:[#allocation2 + $0x60] sm:$0xf]
    %v991 = vld [vmem:[#allocation2 + $0x64] sm:$0xf]
    %v992 = vld [vmem:[#allocation2 + $0x68] sm:$0xf]
    %v993 = vld [vmem:[#allocation2 + $0x6c] sm:$0xf]
    %v994 = vld [vmem:[#allocation2 + $0x70] sm:$0xf]
    %v995 = vld [vmem:[#allocation2 + $0x74] sm:$0xf]
    %v996 = vld [vmem:[#allocation2 + $0x78] sm:$0xf]
    %v997 = vld [vmem:[#allocation2 + $0x7c] sm:$0xf]
    %v1030 = vunpack.c.l.b16 %v966
    %v1031 = vunpack.c.l.b16 %v967
    %v1032 = vunpack.c.l.b16 %v968
    %v1033 = vunpack.c.l.b16 %v969
    %v1034 = vunpack.c.l.b16 %v970
    %v1035 = vunpack.c.l.b16 %v971
    %v1036 = vunpack.c.l.b16 %v972
    %v1037 = vunpack.c.l.b16 %v973
    %v1038 = vunpack.c.l.b16 %v974
    %v1039 = vunpack.c.l.b16 %v975
    %v1040 = vunpack.c.l.b16 %v976
    %v1041 = vunpack.c.l.b16 %v977
    %v1042 = vunpack.c.l.b16 %v978
    %v1043 = vunpack.c.l.b16 %v979
    %v1044 = vunpack.c.l.b16 %v980
    %v1045 = vunpack.c.l.b16 %v981
    %v1046 = vunpack.c.l.b16 %v982
    %v1047 = vunpack.c.l.b16 %v983
    %v1048 = vunpack.c.l.b16 %v984
    %v1049 = vunpack.c.l.b16 %v985
    %v1050 = vunpack.c.l.b16 %v986
    %v1051 = vunpack.c.l.b16 %v987
    %v1052 = vunpack.c.l.b16 %v988
    %v1053 = vunpack.c.l.b16 %v989
    %v1054 = vunpack.c.l.b16 %v990
    %v1055 = vunpack.c.l.b16 %v991
    %v1056 = vunpack.c.l.b16 %v992
    %v1057 = vunpack.c.l.b16 %v993
    %v1058 = vunpack.c.l.b16 %v994
    %v1059 = vunpack.c.l.b16 %v995
    %v1060 = vunpack.c.l.b16 %v996
    %v1061 = vunpack.c.l.b16 %v997
    %v1062 = vpack.c.b16 %v1031, %v1030
    %v1063 = vpack.c.b16 %v1033, %v1032
    %v1064 = vpack.c.b16 %v1035, %v1034
    %v1065 = vpack.c.b16 %v1037, %v1036
    %v1066 = vpack.c.b16 %v1039, %v1038
    %v1067 = vpack.c.b16 %v1041, %v1040
    %v1068 = vpack.c.b16 %v1043, %v1042
    %v1069 = vpack.c.b16 %v1045, %v1044
    %v1070 = vpack.c.b16 %v1047, %v1046
    %v1071 = vpack.c.b16 %v1049, %v1048
    %v1072 = vpack.c.b16 %v1051, %v1050
    %v1073 = vpack.c.b16 %v1053, %v1052
    %v1074 = vpack.c.b16 %v1055, %v1054
    %v1075 = vpack.c.b16 %v1057, %v1056
    %v1076 = vpack.c.b16 %v1059, %v1058
    %v1077 = vpack.c.b16 %v1061, %v1060
    %1094 = vmatprep.subr.bf16.mxu0 0
    %1095 = vmatpush1.bf16.msra.mxu0 %v1062
    %1096 = vmatprep.subr.bf16.mxu0 0
    %1097 = vmatpush1.bf16.msra.mxu0 %v1063
    %1098 = vmatprep.subr.bf16.mxu0 0
    %1099 = vmatpush1.bf16.msra.mxu0 %v1064
    %1100 = vmatprep.subr.bf16.mxu0 0
    %1101 = vmatpush1.bf16.msra.mxu0 %v1065
    %1102 = vmatprep.subr.bf16.mxu0 0
    %1103 = vmatpush1.bf16.msra.mxu0 %v1066
    %1104 = vmatprep.subr.bf16.mxu0 0
    %1105 = vmatpush1.bf16.msra.mxu0 %v1067
    %1106 = vmatprep.subr.bf16.mxu0 0
    %1107 = vmatpush1.bf16.msra.mxu0 %v1068
    %1108 = vmatprep.subr.bf16.mxu0 0
    %1109 = vmatpush1.bf16.msra.mxu0 %v1069
    %1110 = vmatprep.subr.bf16.mxu0 0
    %1111 = vmatpush1.bf16.msra.mxu0 %v1070
    %1112 = vmatprep.subr.bf16.mxu0 0
    %1113 = vmatpush1.bf16.msra.mxu0 %v1071
    %1114 = vmatprep.subr.bf16.mxu0 0
    %1115 = vmatpush1.bf16.msra.mxu0 %v1072
    %1116 = vmatprep.subr.bf16.mxu0 0
    %1117 = vmatpush1.bf16.msra.mxu0 %v1073
    %1118 = vmatprep.subr.bf16.mxu0 0
    %1119 = vmatpush1.bf16.msra.mxu0 %v1074
    %1120 = vmatprep.subr.bf16.mxu0 0
    %1121 = vmatpush1.bf16.msra.mxu0 %v1075
    %1122 = vmatprep.subr.bf16.mxu0 0
    %1123 = vmatpush1.bf16.msra.mxu0 %v1076
    %1124 = vmatprep.subr.bf16.mxu0 0
    %1125 = vmatpush1.bf16.msra.mxu0 %v1077
    %1126 = vmatprep.mubr.bf16.mxu0 %v357
    %1127 = vmatmul.mubr.bf16.gmra.mrb[0].mxu0 %v356
    %v1128 = vpop.f32.mrb[0].mxu0
    %v1129 = vadd.f32 0.0, %v1128
    %v1130 = vpop.f32.mrb[0].mxu0
    %v1131 = vpop.f32.mrb[0].mxu0
    %v1132 = vadd.f32 0.0, %v1131
    %v1133 = vpop.f32.mrb[0].mxu0
    %1134 = vmatprep.mubr.bf16.mxu0 %v359
    %1135 = vmatmul.mubr.bf16.gmra.mrb[0].mxu0 %v358
    %v1136 = vpop.f32.mrb[0].mxu0
    %v1137 = vadd.f32 0.0, %v1136
    %v1138 = vpop.f32.mrb[0].mxu0
    %v1139 = vpop.f32.mrb[0].mxu0
    %v1140 = vadd.f32 0.0, %v1139
    %v1141 = vpop.f32.mrb[0].mxu0
    %1142 = vmatprep.mubr.bf16.mxu0 %v361
    %1143 = vmatmul.mubr.bf16.gmra.mrb[0].mxu0 %v360
    %v1144 = vpop.f32.mrb[0].mxu0
    %v1145 = vadd.f32 0.0, %v1144
    %v1146 = vpop.f32.mrb[0].mxu0
    %v1147 = vpop.f32.mrb[0].mxu0
    %v1148 = vadd.f32 0.0, %v1147
    %v1149 = vpop.f32.mrb[0].mxu0
    %1150 = vmatprep.mubr.bf16.mxu0 %v363
    %1151 = vmatmul.mubr.bf16.gmra.mrb[0].mxu0 %v362
    %v1152 = vpop.f32.mrb[0].mxu0
    %v1153 = vadd.f32 0.0, %v1152
    %v1154 = vpop.f32.mrb[0].mxu0
    %v1155 = vpop.f32.mrb[0].mxu0
    %v1156 = vadd.f32 0.0, %v1155
    %v1157 = vpop.f32.mrb[0].mxu0
    %1158 = vmatprep.mubr.bf16.mxu0 %v365
    %1159 = vmatmul.mubr.bf16.gmra.mrb[0].mxu0 %v364
    %v1160 = vpop.f32.mrb[0].mxu0
    %v1161 = vadd.f32 0.0, %v1160
    %v1162 = vpop.f32.mrb[0].mxu0
    %v1163 = vpop.f32.mrb[0].mxu0
    %v1164 = vadd.f32 0.0, %v1163
    %v1165 = vpop.f32.mrb[0].mxu0
    %1166 = vmatprep.mubr.bf16.mxu0 %v367
    %1167 = vmatmul.mubr.bf16.gmra.mrb[0].mxu0 %v366
    %v1168 = vpop.f32.mrb[0].mxu0
    %v1169 = vadd.f32 0.0, %v1168
    %v1170 = vpop.f32.mrb[0].mxu0
    %v1171 = vpop.f32.mrb[0].mxu0
    %v1172 = vadd.f32 0.0, %v1171
    %v1173 = vpop.f32.mrb[0].mxu0
    %1174 = vmatprep.mubr.bf16.mxu0 %v369
    %1175 = vmatmul.mubr.bf16.gmra.mrb[0].mxu0 %v368
    %v1176 = vpop.f32.mrb[0].mxu0
    %v1177 = vadd.f32 0.0, %v1176
    %v1178 = vpop.f32.mrb[0].mxu0
    %v1179 = vpop.f32.mrb[0].mxu0
    %v1180 = vadd.f32 0.0, %v1179
    %v1181 = vpop.f32.mrb[0].mxu0
    %1182 = vmatprep.mubr.bf16.mxu0 %v371
    %1183 = vmatmul.mubr.bf16.gmra.mrb[0].mxu0 %v370
    %v1184 = vpop.f32.mrb[0].mxu0
    %v1185 = vadd.f32 0.0, %v1184
    %v1186 = vpop.f32.mrb[0].mxu0
    %v1187 = vpop.f32.mrb[0].mxu0
    %v1188 = vadd.f32 0.0, %v1187
    %v1189 = vpop.f32.mrb[0].mxu0
    %1190 = vmatprep.mubr.bf16.mxu0 %v373
    %1191 = vmatmul.mubr.bf16.gmra.mrb[0].mxu0 %v372
    %v1192 = vpop.f32.mrb[0].mxu0
    %v1193 = vadd.f32 0.0, %v1192
    %v1194 = vpop.f32.mrb[0].mxu0
    %v1195 = vpop.f32.mrb[0].mxu0
    %v1196 = vadd.f32 0.0, %v1195
    %v1197 = vpop.f32.mrb[0].mxu0
    %1198 = vmatprep.mubr.bf16.mxu0 %v375
    %1199 = vmatmul.mubr.bf16.gmra.mrb[0].mxu0 %v374
    %v1200 = vpop.f32.mrb[0].mxu0
    %v1201 = vadd.f32 0.0, %v1200
    %v1202 = vpop.f32.mrb[0].mxu0
    %v1203 = vpop.f32.mrb[0].mxu0
    %v1204 = vadd.f32 0.0, %v1203
    %v1205 = vpop.f32.mrb[0].mxu0
    %1206 = vmatprep.mubr.bf16.mxu0 %v377
    %1207 = vmatmul.mubr.bf16.gmra.mrb[0].mxu0 %v376
    %v1208 = vpop.f32.mrb[0].mxu0
    %v1209 = vadd.f32 0.0, %v1208
    %v1210 = vpop.f32.mrb[0].mxu0
    %v1211 = vpop.f32.mrb[0].mxu0
    %v1212 = vadd.f32 0.0, %v1211
    %v1213 = vpop.f32.mrb[0].mxu0
    %1214 = vmatprep.mubr.bf16.mxu0 %v379
    %1215 = vmatmul.mubr.bf16.gmra.mrb[0].mxu0 %v378
    %v1216 = vpop.f32.mrb[0].mxu0
    %v1217 = vadd.f32 0.0, %v1216
    %v1218 = vpop.f32.mrb[0].mxu0
    %v1219 = vpop.f32.mrb[0].mxu0
    %v1220 = vadd.f32 0.0, %v1219
    %v1221 = vpop.f32.mrb[0].mxu0
    %1222 = vmatprep.mubr.bf16.mxu0 %v381
    %1223 = vmatmul.mubr.bf16.gmra.mrb[0].mxu0 %v380
    %v1224 = vpop.f32.mrb[0].mxu0
    %v1225 = vadd.f32 0.0, %v1224
    %v1226 = vpop.f32.mrb[0].mxu0
    %v1227 = vpop.f32.mrb[0].mxu0
    %v1228 = vadd.f32 0.0, %v1227
    %v1229 = vpop.f32.mrb[0].mxu0
    %1230 = vmatprep.mubr.bf16.mxu0 %v383
    %1231 = vmatmul.mubr.bf16.gmra.mrb[0].mxu0 %v382
    %v1232 = vpop.f32.mrb[0].mxu0
    %v1233 = vadd.f32 0.0, %v1232
    %v1234 = vpop.f32.mrb[0].mxu0
    %v1235 = vpop.f32.mrb[0].mxu0
    %v1236 = vadd.f32 0.0, %v1235
    %v1237 = vpop.f32.mrb[0].mxu0
    %1238 = vmatprep.mubr.bf16.mxu0 %v385
    %1239 = vmatmul.mubr.bf16.gmra.mrb[0].mxu0 %v384
    %v1240 = vpop.f32.mrb[0].mxu0
    %v1241 = vadd.f32 0.0, %v1240
    %v1242 = vpop.f32.mrb[0].mxu0
    %v1243 = vpop.f32.mrb[0].mxu0
    %v1244 = vadd.f32 0.0, %v1243
    %v1245 = vpop.f32.mrb[0].mxu0
    %1246 = vmatprep.mubr.bf16.mxu0 %v387
    %1247 = vmatmul.mubr.bf16.gmra.mrb[0].mxu0 %v386
    %v1248 = vpop.f32.mrb[0].mxu0
    %v1249 = vadd.f32 0.0, %v1248
    %v1250 = vpop.f32.mrb[0].mxu0
    %v1251 = vpop.f32.mrb[0].mxu0
    %v1252 = vadd.f32 0.0, %v1251
    %v1253 = vpop.f32.mrb[0].mxu0
    %1254 = vdwg.mxu0
    %v1255 = vadd.f32 %v840, %v1129
    %v1256 = vadd.f32 %v843, %v1132
    %v1257 = vadd.f32 %v848, %v1137
    %v1258 = vadd.f32 %v851, %v1140
    %v1259 = vadd.f32 %v856, %v1145
    %v1260 = vadd.f32 %v859, %v1148
    %v1261 = vadd.f32 %v864, %v1153
    %v1262 = vadd.f32 %v867, %v1156
    %v1263 = vadd.f32 %v872, %v1161
    %v1264 = vadd.f32 %v875, %v1164
    %v1265 = vadd.f32 %v880, %v1169
    %v1266 = vadd.f32 %v883, %v1172
    %v1267 = vadd.f32 %v888, %v1177
    %v1268 = vadd.f32 %v891, %v1180
    %v1269 = vadd.f32 %v896, %v1185
    %v1270 = vadd.f32 %v899, %v1188
    %v1271 = vadd.f32 %v904, %v1193
    %v1272 = vadd.f32 %v907, %v1196
    %v1273 = vadd.f32 %v912, %v1201
    %v1274 = vadd.f32 %v915, %v1204
    %v1275 = vadd.f32 %v920, %v1209
    %v1276 = vadd.f32 %v923, %v1212
    %v1277 = vadd.f32 %v928, %v1217
    %v1278 = vadd.f32 %v931, %v1220
    %v1279 = vadd.f32 %v936, %v1225
    %v1280 = vadd.f32 %v939, %v1228
    %v1281 = vadd.f32 %v944, %v1233
    %v1282 = vadd.f32 %v947, %v1236
    %v1283 = vadd.f32 %v952, %v1241
    %v1284 = vadd.f32 %v955, %v1244
    %v1285 = vadd.f32 %v960, %v1249
    %v1286 = vadd.f32 %v963, %v1252
    %1287 = vst [vmem:[#allocation5] sm:$0xff] %v1255
    %1288 = vst [vmem:[#allocation5 + $0x8] sm:$0xff] %v1256
    %1289 = vst [vmem:[#allocation5 + $0x10] sm:$0xff] %v1257
    %1290 = vst [vmem:[#allocation5 + $0x18] sm:$0xff] %v1258
    %1291 = vst [vmem:[#allocation5 + $0x20] sm:$0xff] %v1259
    %1292 = vst [vmem:[#allocation5 + $0x28] sm:$0xff] %v1260
    %1293 = vst [vmem:[#allocation5 + $0x30] sm:$0xff] %v1261
    %1294 = vst [vmem:[#allocation5 + $0x38] sm:$0xff] %v1262
    %1295 = vst [vmem:[#allocation5 + $0x40] sm:$0xff] %v1263
    %1296 = vst [vmem:[#allocation5 + $0x48] sm:$0xff] %v1264
    %1297 = vst [vmem:[#allocation5 + $0x50] sm:$0xff] %v1265
    %1298 = vst [vmem:[#allocation5 + $0x58] sm:$0xff] %v1266
    %1299 = vst [vmem:[#allocation5 + $0x60] sm:$0xff] %v1267
    %1300 = vst [vmem:[#allocation5 + $0x68] sm:$0xff] %v1268
    %1301 = vst [vmem:[#allocation5 + $0x70] sm:$0xff] %v1269
    %1302 = vst [vmem:[#allocation5 + $0x78] sm:$0xff] %v1270
    %1303 = vst [vmem:[#allocation5 + $0x80] sm:$0xff] %v1271
    %1304 = vst [vmem:[#allocation5 + $0x88] sm:$0xff] %v1272
    %1305 = vst [vmem:[#allocation5 + $0x90] sm:$0xff] %v1273
    %1306 = vst [vmem:[#allocation5 + $0x98] sm:$0xff] %v1274
    %1307 = vst [vmem:[#allocation5 + $0xa0] sm:$0xff] %v1275
    %1308 = vst [vmem:[#allocation5 + $0xa8] sm:$0xff] %v1276
    %1309 = vst [vmem:[#allocation5 + $0xb0] sm:$0xff] %v1277
    %1310 = vst [vmem:[#allocation5 + $0xb8] sm:$0xff] %v1278
    %1311 = vst [vmem:[#allocation5 + $0xc0] sm:$0xff] %v1279
    %1312 = vst [vmem:[#allocation5 + $0xc8] sm:$0xff] %v1280
    %1313 = vst [vmem:[#allocation5 + $0xd0] sm:$0xff] %v1281
    %1314 = vst [vmem:[#allocation5 + $0xd8] sm:$0xff] %v1282
    %1315 = vst [vmem:[#allocation5 + $0xe0] sm:$0xff] %v1283
    %1316 = vst [vmem:[#allocation5 + $0xe8] sm:$0xff] %v1284
    %1317 = vst [vmem:[#allocation5 + $0xf0] sm:$0xff] %v1285
    %1318 = vst [vmem:[#allocation5 + $0xf8] sm:$0xff] %v1286
    // Predicated region
    $region22: #{tpu_custom_call.1} parent=1 // pred_check
      _
    $region23: #{tpu_custom_call.1} parent=1 // pred_check_branch
      %1320 = sbr.rel (0) target = $region25
    $region24: #{tpu_custom_call.1} parent=1 // pred_region
      %s1322 = ssub.s32 4096, 4096
      %1323 = vsyncadd [#allocation4], %s1322
      %s1324 = sshll.u32 [#allocation5], 4
      %s1325 = int_to_ptr.vmem [resolvable:$true] %s1324
      %1330 = dma.vmem_to_hbm [thread:$0]  %s1325, 4096, %s4, [#allocation4], 128, 128, 8
    $region25: #{tpu_custom_call.1} parent=1 // pred_fallthru
      _
    // Predicated region
    $region26: #{tpu_custom_call.1} parent=1 // pred_check
      _
    $region27: #{tpu_custom_call.1} parent=1 // pred_check_branch
      %1332 = sbr.rel (0) target = $region29
    $region28: #{tpu_custom_call.1} parent=1 // pred_region
      %1333 = dma.done [#allocation4], 4096
    $region29: #{tpu_custom_call.1} parent=1 // pred_fallthru
      _
    %1334 = vsyncpa [#allocation3], 1
    %1335 = vsyncpa [#allocation4], 1

</llo_original>
